<compile_context>
chip_gen: v5e
topology: v5e:2x2
jax: 0.10.0
libtpu: 0.0.40
codegen_flags: <defaults>
</compile_context>

<pallas_src>
import functools

import jax
import jax.numpy as jnp
from jax.experimental import pallas as pl
from jax.experimental.pallas import tpu as pltpu


def _round_up(v, m):
    return (v + m - 1) // m * m


def _make_kernel(C, M, H, W, classes, eps, OFF, WP):
    """Build the Pallas kernel body for fixed static shapes / class list."""
    K = len(classes)
    HW = H * W
    P3 = 3 * K                    # conv-input plane rows: [avg_k.., max_k.., mask_k..]
    KC = K * C
    inv_hw = 1.0 / float(HW)
    inv_c = 1.0 / float(C)
    base = OFF - 3 * W - 3        # scratch lane of flat position -(3W+3)
    pow2_w = (W & (W - 1)) == 0

    def kernel(x_ref, m_ref, w_ref, gamma_ref, beta_ref, out_ref, spad_ref):
        x = x_ref[0].astype(jnp.float32)            # (C, HW)
        m = m_ref[0].astype(jnp.float32)            # (M, HW)
        wtab = w_ref[...]                           # (3K, 49) weight-column table
        gamma_col = gamma_ref[...]                  # (C, 1)
        beta_col = beta_ref[...]                    # (C, 1)

        # ---- softmax over the mask/class axis (exact reciprocal) ------------
        mmax = jnp.max(m, axis=0, keepdims=True)            # (1, HW)
        e = jnp.exp(m - mmax)
        denom = jnp.sum(e, axis=0, keepdims=True)            # (1, HW)
        sm = e / denom                                        # (M, HW)

        # Selected class masks, stacked on sublanes.
        selmask = jnp.concatenate([sm[c:c + 1, :] for c in classes], axis=0)  # (K, HW)

        # mask >= 0  =>  mean_c(x*mask) = mask*mean_c(x), max_c(x*mask) = mask*max_c(x)
        xmean = jnp.sum(x, axis=0, keepdims=True) * inv_c     # (1, HW)
        xmax = jnp.max(x, axis=0, keepdims=True)              # (1, HW)
        avg = selmask * xmean                                  # (K, HW)
        mxo = selmask * xmax                                   # (K, HW)

        # Conv-input plane stack, channel-major rows (matches weight table rows).
        planes = jnp.concatenate([avg, mxo, selmask], axis=0)  # (3K, HW)

        # Zero-padded plane stack written once per step at a 128-aligned offset.
        spad_ref[:, 0:OFF] = jnp.zeros((P3, OFF), jnp.float32)
        spad_ref[:, OFF:OFF + HW] = planes
        spad_ref[:, OFF + HW:WP] = jnp.zeros((P3, WP - OFF - HW), jnp.float32)

        # Column-validity masks built in-kernel (no extra HBM input).
        lane = jax.lax.broadcasted_iota(jnp.int32, (1, HW), 1)
        if pow2_w:
            colidx = lane & (W - 1)
        else:
            colidx = lane % W

        # ---- 7x7 "spatial attention" conv on the whole (3K, HW) stack -------
        # out[k,p] = sum_{c,dy,dx} w[k,c,dy,dx] * padded[c*K+k, base + dy*W + dx + p]
        # with horizontal wraparound zeroed by the per-dx column mask.
        acc = None
        for dx in range(7):
            u = None
            for dy in range(7):
                tap = dy * 7 + dx
                wcol = wtab[:, tap:tap + 1]                          # (3K, 1)
                off = base + dy * W + dx
                win = spad_ref[:, off:off + HW]                      # (3K, HW)
                term = wcol * win
                u = term if u is None else u + term
            if dx != 3:
                valid = (colidx >= (3 - dx)) & (colidx < (W + 3 - dx))  # (1, HW)
                u = jnp.where(valid, u, 0.0)
            acc = u if acc is None else acc + u                       # (3K, HW)

        # Sum the 3 conv input channels per class, sigmoid gate.
        atten = jax.nn.sigmoid(acc[0:K, :] + acc[K:2 * K, :] + acc[2 * K:3 * K, :])  # (K, HW)

        # out_k = x * mask_k * atten_k  for all classes at once.
        gate = selmask * atten                                        # (K, HW)
        out3 = x[None, :, :] * gate[:, None, :]                       # (K, C, HW)
        out_flat = out3.reshape(KC, HW)                               # (K*C, HW)

        # InstanceNorm2d statistics fused across all K*C rows (two-pass).
        mu = jnp.sum(out_flat, axis=1, keepdims=True) * inv_hw        # (K*C, 1)
        cen = out_flat - mu
        var = jnp.sum(cen * cen, axis=1, keepdims=True) * inv_hw      # (K*C, 1)
        norm = cen * jax.lax.rsqrt(var + eps)                         # (K*C, HW)

        # Sum over classes, then apply the shared affine once:  sum_k(n_k*g + b)
        norm3 = norm.reshape(K, C, HW)
        total = norm3[0]
        for k in range(1, K):
            total = total + norm3[k]
        result = total * gamma_col + (float(K) * beta_col)            # (C, HW)

        out_ref[0] = jnp.maximum(result, 0.0).astype(out_ref.dtype)

    return kernel


@functools.partial(jax.jit, static_argnames=("classin_classes", "eps"))
def class_in_block_forward(x, masks, conv_w, gamma, beta,
                           classin_classes, eps=1e-5):
    """Pallas implementation of class_in_block.forward(x, masks)."""
    N, C, H, W = x.shape
    M = masks.shape[1]
    K = len(classin_classes)
    assert conv_w.shape == (K, 3, 7, 7)
    HW = H * W

    # Lane-dense layout: spatial dims flattened onto the lane axis.
    x2 = x.reshape(N, C, HW)
    m2 = masks.reshape(N, M, HW)

    # Channel-major weight-column table: row = c*K + k, col = dy*7 + dx.
    wtab = jnp.transpose(conv_w.astype(jnp.float32), (1, 0, 2, 3)).reshape(3 * K, 49)
    gamma2 = gamma.reshape(C, 1).astype(jnp.float32)
    beta2 = beta.reshape(C, 1).astype(jnp.float32)

    # Padded-plane scratch geometry: planes stored at a 128-aligned lane offset.
    OFF = _round_up(3 * W + 3, 128)
    WP = _round_up(OFF + HW + 3 * W + 3, 128)

    kernel = _make_kernel(C, M, H, W, tuple(classin_classes), eps, OFF, WP)

    out2 = pl.pallas_call(
        kernel,
        out_shape=jax.ShapeDtypeStruct((N, C, HW), x.dtype),
        grid_spec=pltpu.PrefetchScalarGridSpec(
            num_scalar_prefetch=0,
            grid=(N,),
            in_specs=[
                pl.BlockSpec((1, C, HW), lambda n: (n, 0, 0)),   # x (lane-dense)
                pl.BlockSpec((1, M, HW), lambda n: (n, 0, 0)),   # masks
                pl.BlockSpec((3 * K, 49), lambda n: (0, 0)),     # conv weight columns
                pl.BlockSpec((C, 1), lambda n: (0, 0)),          # IN gamma
                pl.BlockSpec((C, 1), lambda n: (0, 0)),          # IN beta
            ],
            out_specs=pl.BlockSpec((1, C, HW), lambda n: (n, 0, 0)),
            scratch_shapes=[pltpu.VMEM((3 * K, WP), jnp.float32)],  # padded plane stack
        ),
        compiler_params=pltpu.CompilerParams(
            # Batch axis sharded across TensorCores on v7x; no-op on v5e/v6e.
            dimension_semantics=("parallel",)),
    )(x2, m2, wtab, gamma2, beta2)

    return out2.reshape(N, C, H, W)


def reference_forward(x, masks, conv_w, gamma, beta, classin_classes, eps=1e-5):
    """Pure-JAX reference mirroring the PyTorch module semantics."""
    m = jax.nn.softmax(masks, axis=1)
    total = jnp.zeros_like(x)
    for idx, cls in enumerate(classin_classes):
        mask = m[:, cls:cls + 1]                       # (N,1,H,W)
        mid = x * mask
        avg_out = jnp.mean(mid, axis=1, keepdims=True)
        max_out = jnp.max(mid, axis=1, keepdims=True)
        atten_in = jnp.concatenate([avg_out, max_out, mask], axis=1)  # (N,3,H,W)
        conv = jax.lax.conv_general_dilated(
            atten_in, conv_w[idx:idx + 1],
            window_strides=(1, 1), padding=((3, 3), (3, 3)),
            dimension_numbers=("NCHW", "OIHW", "NCHW"),
            precision=jax.lax.Precision.HIGHEST)
        atten = jax.nn.sigmoid(conv)
        out = mid * atten
        mu = jnp.mean(out, axis=(2, 3), keepdims=True)
        var = jnp.mean((out - mu) ** 2, axis=(2, 3), keepdims=True)
        out = (out - mu) * jax.lax.rsqrt(var + eps)
        out = out * gamma[None, :, None, None] + beta[None, :, None, None]
        total = total + out
    return jnp.maximum(total, 0.0)


if __name__ == "__main__":
    # Small, module-consistent shapes.
    N, C, H, W = 2, 8, 16, 16          # inplanes = 8
    M = 5                              # number of mask channels
    classin_classes = (0, 2, 4)        # classes selected from the masks
    K = len(classin_classes)

    key = jax.random.PRNGKey(0)
    kx, km, kw, kg, kb = jax.random.split(key, 5)

    x = jax.random.normal(kx, (N, C, H, W), dtype=jnp.float32)
    masks = jax.random.normal(km, (N, M, H, W), dtype=jnp.float32)

    # Deterministic parameter init (synthetic — not loaded from checkpoint).
    conv_w = 0.05 * jax.random.normal(kw, (K, 3, 7, 7), dtype=jnp.float32)
    gamma = 1.0 + 0.1 * jax.random.normal(kg, (C,), dtype=jnp.float32)  # IN affine weight
    beta = 0.05 * jax.random.normal(kb, (C,), dtype=jnp.float32)        # IN affine bias

    out = class_in_block_forward(x, masks, conv_w, gamma, beta, classin_classes)
    out = jax.block_until_ready(out)

    ref = reference_forward(x, masks, conv_w, gamma, beta, classin_classes)
    ref = jax.block_until_ready(ref)

    max_err = float(jnp.max(jnp.abs(out - ref)))
    assert out.shape == (N, C, H, W)
    # Exact softmax reciprocal and two-pass InstanceNorm variance -> only
    # rounding-order differences remain vs the reference.
    assert max_err < 2e-3, f"mismatch vs reference: {max_err}"

    print("KERNEL_OK")
</pallas_src>

<mosaic_0001>
module attributes {stable_mosaic.version = 11 : i64} {
  func.func @kernel(%arg0: i32, %arg1: memref<1x8x256xf32, #tpu.memory_space<vmem>>, %arg2: memref<1x5x256xf32, #tpu.memory_space<vmem>>, %arg3: memref<9x49xf32, #tpu.memory_space<vmem>>, %arg4: memref<8x1xf32, #tpu.memory_space<vmem>>, %arg5: memref<8x1xf32, #tpu.memory_space<vmem>>, %arg6: memref<1x8x256xf32, #tpu.memory_space<vmem>>, %arg7: memref<9x512xf32, #tpu.memory_space<vmem>>) attributes {dimension_semantics = [#tpu.dimension_semantics<parallel>], iteration_bounds = array<i64: 2>, scalar_prefetch = 0 : i64, scratch_operands = 1 : i64, tpu.core_type = #tpu.core_type<tc>, window_params = [{transform_indices = @transform_0, window_bounds = array<i64: 1, 8, 256>}, {transform_indices = @transform_1, window_bounds = array<i64: 1, 5, 256>}, {pipeline_mode = #tpu.pipeline_mode<synchronous>, transform_indices = @transform_2, window_bounds = array<i64: 9, 49>}, {pipeline_mode = #tpu.pipeline_mode<synchronous>, transform_indices = @transform_3, window_bounds = array<i64: 8, 1>}, {pipeline_mode = #tpu.pipeline_mode<synchronous>, transform_indices = @transform_4, window_bounds = array<i64: 8, 1>}, {transform_indices = @transform_5, window_bounds = array<i64: 1, 8, 256>}]} {
    %c0 = arith.constant 0 : index
    %c0_0 = arith.constant 0 : index
    %c0_1 = arith.constant 0 : index
    %0 = vector.load %arg1[%c0, %c0_0, %c0_1] : memref<1x8x256xf32, #tpu.memory_space<vmem>>, vector<1x8x256xf32>
    %1 = vector.shape_cast %0 : vector<1x8x256xf32> to vector<8x256xf32>
    %c0_2 = arith.constant 0 : index
    %c0_3 = arith.constant 0 : index
    %c0_4 = arith.constant 0 : index
    %2 = vector.load %arg2[%c0_2, %c0_3, %c0_4] : memref<1x5x256xf32, #tpu.memory_space<vmem>>, vector<1x5x256xf32>
    %3 = vector.shape_cast %2 : vector<1x5x256xf32> to vector<5x256xf32>
    %c0_5 = arith.constant 0 : index
    %c0_6 = arith.constant 0 : index
    %4 = vector.load %arg3[%c0_5, %c0_6] : memref<9x49xf32, #tpu.memory_space<vmem>>, vector<9x49xf32>
    %c0_7 = arith.constant 0 : index
    %c0_8 = arith.constant 0 : index
    %5 = vector.load %arg4[%c0_7, %c0_8] : memref<8x1xf32, #tpu.memory_space<vmem>>, vector<8x1xf32>
    %c0_9 = arith.constant 0 : index
    %c0_10 = arith.constant 0 : index
    %6 = vector.load %arg5[%c0_9, %c0_10] : memref<8x1xf32, #tpu.memory_space<vmem>>, vector<8x1xf32>
    %cst = arith.constant dense<0xFF800000> : vector<256xf32>
    %7 = vector.multi_reduction <maximumf>, %3, %cst [0] : vector<5x256xf32> to vector<256xf32>
    %8 = vector.shape_cast %7 : vector<256xf32> to vector<1x256xf32>
    %9 = vector.broadcast %8 : vector<1x256xf32> to vector<5x256xf32>
    %10 = arith.subf %3, %9 : vector<5x256xf32>
    %11 = math.exp %10 : vector<5x256xf32>
    %cst_11 = arith.constant dense<0.000000e+00> : vector<256xf32>
    %12 = vector.multi_reduction <add>, %11, %cst_11 [0] : vector<5x256xf32> to vector<256xf32>
    %13 = vector.shape_cast %12 : vector<256xf32> to vector<1x256xf32>
    %14 = vector.broadcast %13 : vector<1x256xf32> to vector<5x256xf32>
    %15 = arith.divf %11, %14 : vector<5x256xf32>
    %16 = vector.extract_strided_slice %15 {offsets = [0, 0], sizes = [1, 256], strides = [1, 1]} : vector<5x256xf32> to vector<1x256xf32>
    %17 = vector.extract_strided_slice %15 {offsets = [2, 0], sizes = [1, 256], strides = [1, 1]} : vector<5x256xf32> to vector<1x256xf32>
    %18 = vector.extract_strided_slice %15 {offsets = [4, 0], sizes = [1, 256], strides = [1, 1]} : vector<5x256xf32> to vector<1x256xf32>
    %19 = tpu.concatenate %16, %17, %18 in 0 : vector<1x256xf32>, vector<1x256xf32>, vector<1x256xf32> -> vector<3x256xf32>
    %cst_12 = arith.constant dense<0.000000e+00> : vector<256xf32>
    %20 = vector.multi_reduction <add>, %1, %cst_12 [0] : vector<8x256xf32> to vector<256xf32>
    %21 = vector.shape_cast %20 : vector<256xf32> to vector<1x256xf32>
    %cst_13 = arith.constant 1.250000e-01 : f32
    %22 = vector.broadcast %cst_13 : f32 to vector<1x256xf32>
    %23 = arith.mulf %21, %22 : vector<1x256xf32>
    %cst_14 = arith.constant dense<0xFF800000> : vector<256xf32>
    %24 = vector.multi_reduction <maximumf>, %1, %cst_14 [0] : vector<8x256xf32> to vector<256xf32>
    %25 = vector.shape_cast %24 : vector<256xf32> to vector<1x256xf32>
    %26 = vector.broadcast %23 : vector<1x256xf32> to vector<3x256xf32>
    %27 = arith.mulf %19, %26 : vector<3x256xf32>
    %28 = vector.broadcast %25 : vector<1x256xf32> to vector<3x256xf32>
    %29 = arith.mulf %19, %28 : vector<3x256xf32>
    %30 = tpu.concatenate %27, %29, %19 in 0 : vector<3x256xf32>, vector<3x256xf32>, vector<3x256xf32> -> vector<9x256xf32>
    %cst_15 = arith.constant 0.000000e+00 : f32
    %31 = vector.broadcast %cst_15 : f32 to vector<9x128xf32>
    %c0_16 = arith.constant 0 : index
    %c0_17 = arith.constant 0 : index
    %32 = vector.load %arg7[%c0_16, %c0_17] : memref<9x512xf32, #tpu.memory_space<vmem>>, vector<9x128xf32>
    tpu.vector_store %arg7[%c0_16, %c0_17], %31 {strides = array<i32>} : memref<9x512xf32, #tpu.memory_space<vmem>>, vector<9x128xf32>,
    %c0_18 = arith.constant 0 : index
    %c128 = arith.constant 128 : index
    %33 = vector.load %arg7[%c0_18, %c128] : memref<9x512xf32, #tpu.memory_space<vmem>>, vector<9x256xf32>
    tpu.vector_store %arg7[%c0_18, %c128], %30 {strides = array<i32>} : memref<9x512xf32, #tpu.memory_space<vmem>>, vector<9x256xf32>,
    %cst_19 = arith.constant 0.000000e+00 : f32
    %34 = vector.broadcast %cst_19 : f32 to vector<9x128xf32>
    %c0_20 = arith.constant 0 : index
    %c384 = arith.constant 384 : index
    %35 = vector.load %arg7[%c0_20, %c384] : memref<9x512xf32, #tpu.memory_space<vmem>>, vector<9x128xf32>
    tpu.vector_store %arg7[%c0_20, %c384], %34 {strides = array<i32>} : memref<9x512xf32, #tpu.memory_space<vmem>>, vector<9x128xf32>,
    %36 = tpu.iota {dimensions = array<i32: 1>} : vector<1x256xi32>
    %c15_i32 = arith.constant 15 : i32
    %37 = vector.broadcast %c15_i32 : i32 to vector<1x256xi32>
    %38 = arith.andi %36, %37 : vector<1x256xi32>
    %39 = vector.extract_strided_slice %4 {offsets = [0, 0], sizes = [9, 1], strides = [1, 1]} : vector<9x49xf32> to vector<9x1xf32>
    %c0_21 = arith.constant 0 : index
    %c77 = arith.constant 77 : index
    %40 = vector.load %arg7[%c0_21, %c77] : memref<9x512xf32, #tpu.memory_space<vmem>>, vector<9x256xf32>
    %41 = vector.broadcast %39 : vector<9x1xf32> to vector<9x256xf32>
    %42 = arith.mulf %41, %40 : vector<9x256xf32>
    %43 = vector.extract_strided_slice %4 {offsets = [0, 7], sizes = [9, 1], strides = [1, 1]} : vector<9x49xf32> to vector<9x1xf32>
    %c0_22 = arith.constant 0 : index
    %c93 = arith.constant 93 : index
    %44 = vector.load %arg7[%c0_22, %c93] : memref<9x512xf32, #tpu.memory_space<vmem>>, vector<9x256xf32>
    %45 = vector.broadcast %43 : vector<9x1xf32> to vector<9x256xf32>
    %46 = arith.mulf %45, %44 : vector<9x256xf32>
    %47 = arith.addf %42, %46 : vector<9x256xf32>
    %48 = vector.extract_strided_slice %4 {offsets = [0, 14], sizes = [9, 1], strides = [1, 1]} : vector<9x49xf32> to vector<9x1xf32>
    %c0_23 = arith.constant 0 : index
    %c109 = arith.constant 109 : index
    %49 = vector.load %arg7[%c0_23, %c109] : memref<9x512xf32, #tpu.memory_space<vmem>>, vector<9x256xf32>
    %50 = vector.broadcast %48 : vector<9x1xf32> to vector<9x256xf32>
    %51 = arith.mulf %50, %49 : vector<9x256xf32>
    %52 = arith.addf %47, %51 : vector<9x256xf32>
    %53 = vector.extract_strided_slice %4 {offsets = [0, 21], sizes = [9, 1], strides = [1, 1]} : vector<9x49xf32> to vector<9x1xf32>
    %c0_24 = arith.constant 0 : index
    %c125 = arith.constant 125 : index
    %54 = vector.load %arg7[%c0_24, %c125] : memref<9x512xf32, #tpu.memory_space<vmem>>, vector<9x256xf32>
    %55 = vector.broadcast %53 : vector<9x1xf32> to vector<9x256xf32>
    %56 = arith.mulf %55, %54 : vector<9x256xf32>
    %57 = arith.addf %52, %56 : vector<9x256xf32>
    %58 = vector.extract_strided_slice %4 {offsets = [0, 28], sizes = [9, 1], strides = [1, 1]} : vector<9x49xf32> to vector<9x1xf32>
    %c0_25 = arith.constant 0 : index
    %c141 = arith.constant 141 : index
    %59 = vector.load %arg7[%c0_25, %c141] : memref<9x512xf32, #tpu.memory_space<vmem>>, vector<9x256xf32>
    %60 = vector.broadcast %58 : vector<9x1xf32> to vector<9x256xf32>
    %61 = arith.mulf %60, %59 : vector<9x256xf32>
    %62 = arith.addf %57, %61 : vector<9x256xf32>
    %63 = vector.extract_strided_slice %4 {offsets = [0, 35], sizes = [9, 1], strides = [1, 1]} : vector<9x49xf32> to vector<9x1xf32>
    %c0_26 = arith.constant 0 : index
    %c157 = arith.constant 157 : index
    %64 = vector.load %arg7[%c0_26, %c157] : memref<9x512xf32, #tpu.memory_space<vmem>>, vector<9x256xf32>
    %65 = vector.broadcast %63 : vector<9x1xf32> to vector<9x256xf32>
    %66 = arith.mulf %65, %64 : vector<9x256xf32>
    %67 = arith.addf %62, %66 : vector<9x256xf32>
    %68 = vector.extract_strided_slice %4 {offsets = [0, 42], sizes = [9, 1], strides = [1, 1]} : vector<9x49xf32> to vector<9x1xf32>
    %c0_27 = arith.constant 0 : index
    %c173 = arith.constant 173 : index
    %69 = vector.load %arg7[%c0_27, %c173] : memref<9x512xf32, #tpu.memory_space<vmem>>, vector<9x256xf32>
    %70 = vector.broadcast %68 : vector<9x1xf32> to vector<9x256xf32>
    %71 = arith.mulf %70, %69 : vector<9x256xf32>
    %72 = arith.addf %67, %71 : vector<9x256xf32>
    %c3_i32 = arith.constant 3 : i32
    %73 = vector.broadcast %c3_i32 : i32 to vector<1x256xi32>
    %74 = arith.cmpi sge, %38, %73 : vector<1x256xi32>
    %c19_i32 = arith.constant 19 : i32
    %75 = vector.broadcast %c19_i32 : i32 to vector<1x256xi32>
    %76 = arith.cmpi slt, %38, %75 : vector<1x256xi32>
    %77 = arith.andi %74, %76 : vector<1x256xi1>
    %cst_28 = arith.constant 0.000000e+00 : f32
    %78 = vector.shape_cast %77 : vector<1x256xi1> to vector<1x256xi1>
    %79 = vector.broadcast %78 : vector<1x256xi1> to vector<9x256xi1>
    %80 = vector.broadcast %cst_28 : f32 to vector<9x256xf32>
    %81 = arith.select %79, %72, %80 : vector<9x256xi1>, vector<9x256xf32>
    %82 = vector.extract_strided_slice %4 {offsets = [0, 1], sizes = [9, 1], strides = [1, 1]} : vector<9x49xf32> to vector<9x1xf32>
    %c0_29 = arith.constant 0 : index
    %c78 = arith.constant 78 : index
    %83 = vector.load %arg7[%c0_29, %c78] : memref<9x512xf32, #tpu.memory_space<vmem>>, vector<9x256xf32>
    %84 = vector.broadcast %82 : vector<9x1xf32> to vector<9x256xf32>
    %85 = arith.mulf %84, %83 : vector<9x256xf32>
    %86 = vector.extract_strided_slice %4 {offsets = [0, 8], sizes = [9, 1], strides = [1, 1]} : vector<9x49xf32> to vector<9x1xf32>
    %c0_30 = arith.constant 0 : index
    %c94 = arith.constant 94 : index
    %87 = vector.load %arg7[%c0_30, %c94] : memref<9x512xf32, #tpu.memory_space<vmem>>, vector<9x256xf32>
    %88 = vector.broadcast %86 : vector<9x1xf32> to vector<9x256xf32>
    %89 = arith.mulf %88, %87 : vector<9x256xf32>
    %90 = arith.addf %85, %89 : vector<9x256xf32>
    %91 = vector.extract_strided_slice %4 {offsets = [0, 15], sizes = [9, 1], strides = [1, 1]} : vector<9x49xf32> to vector<9x1xf32>
    %c0_31 = arith.constant 0 : index
    %c110 = arith.constant 110 : index
    %92 = vector.load %arg7[%c0_31, %c110] : memref<9x512xf32, #tpu.memory_space<vmem>>, vector<9x256xf32>
    %93 = vector.broadcast %91 : vector<9x1xf32> to vector<9x256xf32>
    %94 = arith.mulf %93, %92 : vector<9x256xf32>
    %95 = arith.addf %90, %94 : vector<9x256xf32>
    %96 = vector.extract_strided_slice %4 {offsets = [0, 22], sizes = [9, 1], strides = [1, 1]} : vector<9x49xf32> to vector<9x1xf32>
    %c0_32 = arith.constant 0 : index
    %c126 = arith.constant 126 : index
    %97 = vector.load %arg7[%c0_32, %c126] : memref<9x512xf32, #tpu.memory_space<vmem>>, vector<9x256xf32>
    %98 = vector.broadcast %96 : vector<9x1xf32> to vector<9x256xf32>
    %99 = arith.mulf %98, %97 : vector<9x256xf32>
    %100 = arith.addf %95, %99 : vector<9x256xf32>
    %101 = vector.extract_strided_slice %4 {offsets = [0, 29], sizes = [9, 1], strides = [1, 1]} : vector<9x49xf32> to vector<9x1xf32>
    %c0_33 = arith.constant 0 : index
    %c142 = arith.constant 142 : index
    %102 = vector.load %arg7[%c0_33, %c142] : memref<9x512xf32, #tpu.memory_space<vmem>>, vector<9x256xf32>
    %103 = vector.broadcast %101 : vector<9x1xf32> to vector<9x256xf32>
    %104 = arith.mulf %103, %102 : vector<9x256xf32>
    %105 = arith.addf %100, %104 : vector<9x256xf32>
    %106 = vector.extract_strided_slice %4 {offsets = [0, 36], sizes = [9, 1], strides = [1, 1]} : vector<9x49xf32> to vector<9x1xf32>
    %c0_34 = arith.constant 0 : index
    %c158 = arith.constant 158 : index
    %107 = vector.load %arg7[%c0_34, %c158] : memref<9x512xf32, #tpu.memory_space<vmem>>, vector<9x256xf32>
    %108 = vector.broadcast %106 : vector<9x1xf32> to vector<9x256xf32>
    %109 = arith.mulf %108, %107 : vector<9x256xf32>
    %110 = arith.addf %105, %109 : vector<9x256xf32>
    %111 = vector.extract_strided_slice %4 {offsets = [0, 43], sizes = [9, 1], strides = [1, 1]} : vector<9x49xf32> to vector<9x1xf32>
    %c0_35 = arith.constant 0 : index
    %c174 = arith.constant 174 : index
    %112 = vector.load %arg7[%c0_35, %c174] : memref<9x512xf32, #tpu.memory_space<vmem>>, vector<9x256xf32>
    %113 = vector.broadcast %111 : vector<9x1xf32> to vector<9x256xf32>
    %114 = arith.mulf %113, %112 : vector<9x256xf32>
    %115 = arith.addf %110, %114 : vector<9x256xf32>
    %c2_i32 = arith.constant 2 : i32
    %116 = vector.broadcast %c2_i32 : i32 to vector<1x256xi32>
    %117 = arith.cmpi sge, %38, %116 : vector<1x256xi32>
    %c18_i32 = arith.constant 18 : i32
    %118 = vector.broadcast %c18_i32 : i32 to vector<1x256xi32>
    %119 = arith.cmpi slt, %38, %118 : vector<1x256xi32>
    %120 = arith.andi %117, %119 : vector<1x256xi1>
    %cst_36 = arith.constant 0.000000e+00 : f32
    %121 = vector.shape_cast %120 : vector<1x256xi1> to vector<1x256xi1>
    %122 = vector.broadcast %121 : vector<1x256xi1> to vector<9x256xi1>
    %123 = vector.broadcast %cst_36 : f32 to vector<9x256xf32>
    %124 = arith.select %122, %115, %123 : vector<9x256xi1>, vector<9x256xf32>
    %125 = arith.addf %81, %124 : vector<9x256xf32>
    %126 = vector.extract_strided_slice %4 {offsets = [0, 2], sizes = [9, 1], strides = [1, 1]} : vector<9x49xf32> to vector<9x1xf32>
    %c0_37 = arith.constant 0 : index
    %c79 = arith.constant 79 : index
    %127 = vector.load %arg7[%c0_37, %c79] : memref<9x512xf32, #tpu.memory_space<vmem>>, vector<9x256xf32>
    %128 = vector.broadcast %126 : vector<9x1xf32> to vector<9x256xf32>
    %129 = arith.mulf %128, %127 : vector<9x256xf32>
    %130 = vector.extract_strided_slice %4 {offsets = [0, 9], sizes = [9, 1], strides = [1, 1]} : vector<9x49xf32> to vector<9x1xf32>
    %c0_38 = arith.constant 0 : index
    %c95 = arith.constant 95 : index
    %131 = vector.load %arg7[%c0_38, %c95] : memref<9x512xf32, #tpu.memory_space<vmem>>, vector<9x256xf32>
    %132 = vector.broadcast %130 : vector<9x1xf32> to vector<9x256xf32>
    %133 = arith.mulf %132, %131 : vector<9x256xf32>
    %134 = arith.addf %129, %133 : vector<9x256xf32>
    %135 = vector.extract_strided_slice %4 {offsets = [0, 16], sizes = [9, 1], strides = [1, 1]} : vector<9x49xf32> to vector<9x1xf32>
    %c0_39 = arith.constant 0 : index
    %c111 = arith.constant 111 : index
    %136 = vector.load %arg7[%c0_39, %c111] : memref<9x512xf32, #tpu.memory_space<vmem>>, vector<9x256xf32>
    %137 = vector.broadcast %135 : vector<9x1xf32> to vector<9x256xf32>
    %138 = arith.mulf %137, %136 : vector<9x256xf32>
    %139 = arith.addf %134, %138 : vector<9x256xf32>
    %140 = vector.extract_strided_slice %4 {offsets = [0, 23], sizes = [9, 1], strides = [1, 1]} : vector<9x49xf32> to vector<9x1xf32>
    %c0_40 = arith.constant 0 : index
    %c127 = arith.constant 127 : index
    %141 = vector.load %arg7[%c0_40, %c127] : memref<9x512xf32, #tpu.memory_space<vmem>>, vector<9x256xf32>
    %142 = vector.broadcast %140 : vector<9x1xf32> to vector<9x256xf32>
    %143 = arith.mulf %142, %141 : vector<9x256xf32>
    %144 = arith.addf %139, %143 : vector<9x256xf32>
    %145 = vector.extract_strided_slice %4 {offsets = [0, 30], sizes = [9, 1], strides = [1, 1]} : vector<9x49xf32> to vector<9x1xf32>
    %c0_41 = arith.constant 0 : index
    %c143 = arith.constant 143 : index
    %146 = vector.load %arg7[%c0_41, %c143] : memref<9x512xf32, #tpu.memory_space<vmem>>, vector<9x256xf32>
    %147 = vector.broadcast %145 : vector<9x1xf32> to vector<9x256xf32>
    %148 = arith.mulf %147, %146 : vector<9x256xf32>
    %149 = arith.addf %144, %148 : vector<9x256xf32>
    %150 = vector.extract_strided_slice %4 {offsets = [0, 37], sizes = [9, 1], strides = [1, 1]} : vector<9x49xf32> to vector<9x1xf32>
    %c0_42 = arith.constant 0 : index
    %c159 = arith.constant 159 : index
    %151 = vector.load %arg7[%c0_42, %c159] : memref<9x512xf32, #tpu.memory_space<vmem>>, vector<9x256xf32>
    %152 = vector.broadcast %150 : vector<9x1xf32> to vector<9x256xf32>
    %153 = arith.mulf %152, %151 : vector<9x256xf32>
    %154 = arith.addf %149, %153 : vector<9x256xf32>
    %155 = vector.extract_strided_slice %4 {offsets = [0, 44], sizes = [9, 1], strides = [1, 1]} : vector<9x49xf32> to vector<9x1xf32>
    %c0_43 = arith.constant 0 : index
    %c175 = arith.constant 175 : index
    %156 = vector.load %arg7[%c0_43, %c175] : memref<9x512xf32, #tpu.memory_space<vmem>>, vector<9x256xf32>
    %157 = vector.broadcast %155 : vector<9x1xf32> to vector<9x256xf32>
    %158 = arith.mulf %157, %156 : vector<9x256xf32>
    %159 = arith.addf %154, %158 : vector<9x256xf32>
    %c1_i32 = arith.constant 1 : i32
    %160 = vector.broadcast %c1_i32 : i32 to vector<1x256xi32>
    %161 = arith.cmpi sge, %38, %160 : vector<1x256xi32>
    %c17_i32 = arith.constant 17 : i32
    %162 = vector.broadcast %c17_i32 : i32 to vector<1x256xi32>
    %163 = arith.cmpi slt, %38, %162 : vector<1x256xi32>
    %164 = arith.andi %161, %163 : vector<1x256xi1>
    %cst_44 = arith.constant 0.000000e+00 : f32
    %165 = vector.shape_cast %164 : vector<1x256xi1> to vector<1x256xi1>
    %166 = vector.broadcast %165 : vector<1x256xi1> to vector<9x256xi1>
    %167 = vector.broadcast %cst_44 : f32 to vector<9x256xf32>
    %168 = arith.select %166, %159, %167 : vector<9x256xi1>, vector<9x256xf32>
    %169 = arith.addf %125, %168 : vector<9x256xf32>
    %170 = vector.extract_strided_slice %4 {offsets = [0, 3], sizes = [9, 1], strides = [1, 1]} : vector<9x49xf32> to vector<9x1xf32>
    %c0_45 = arith.constant 0 : index
    %c80 = arith.constant 80 : index
    %171 = vector.load %arg7[%c0_45, %c80] : memref<9x512xf32, #tpu.memory_space<vmem>>, vector<9x256xf32>
    %172 = vector.broadcast %170 : vector<9x1xf32> to vector<9x256xf32>
    %173 = arith.mulf %172, %171 : vector<9x256xf32>
    %174 = vector.extract_strided_slice %4 {offsets = [0, 10], sizes = [9, 1], strides = [1, 1]} : vector<9x49xf32> to vector<9x1xf32>
    %c0_46 = arith.constant 0 : index
    %c96 = arith.constant 96 : index
    %175 = vector.load %arg7[%c0_46, %c96] : memref<9x512xf32, #tpu.memory_space<vmem>>, vector<9x256xf32>
    %176 = vector.broadcast %174 : vector<9x1xf32> to vector<9x256xf32>
    %177 = arith.mulf %176, %175 : vector<9x256xf32>
    %178 = arith.addf %173, %177 : vector<9x256xf32>
    %179 = vector.extract_strided_slice %4 {offsets = [0, 17], sizes = [9, 1], strides = [1, 1]} : vector<9x49xf32> to vector<9x1xf32>
    %c0_47 = arith.constant 0 : index
    %c112 = arith.constant 112 : index
    %180 = vector.load %arg7[%c0_47, %c112] : memref<9x512xf32, #tpu.memory_space<vmem>>, vector<9x256xf32>
    %181 = vector.broadcast %179 : vector<9x1xf32> to vector<9x256xf32>
    %182 = arith.mulf %181, %180 : vector<9x256xf32>
    %183 = arith.addf %178, %182 : vector<9x256xf32>
    %184 = vector.extract_strided_slice %4 {offsets = [0, 24], sizes = [9, 1], strides = [1, 1]} : vector<9x49xf32> to vector<9x1xf32>
    %c0_48 = arith.constant 0 : index
    %c128_49 = arith.constant 128 : index
    %185 = vector.load %arg7[%c0_48, %c128_49] : memref<9x512xf32, #tpu.memory_space<vmem>>, vector<9x256xf32>
    %186 = vector.broadcast %184 : vector<9x1xf32> to vector<9x256xf32>
    %187 = arith.mulf %186, %185 : vector<9x256xf32>
    %188 = arith.addf %183, %187 : vector<9x256xf32>
    %189 = vector.extract_strided_slice %4 {offsets = [0, 31], sizes = [9, 1], strides = [1, 1]} : vector<9x49xf32> to vector<9x1xf32>
    %c0_50 = arith.constant 0 : index
    %c144 = arith.constant 144 : index
    %190 = vector.load %arg7[%c0_50, %c144] : memref<9x512xf32, #tpu.memory_space<vmem>>, vector<9x256xf32>
    %191 = vector.broadcast %189 : vector<9x1xf32> to vector<9x256xf32>
    %192 = arith.mulf %191, %190 : vector<9x256xf32>
    %193 = arith.addf %188, %192 : vector<9x256xf32>
    %194 = vector.extract_strided_slice %4 {offsets = [0, 38], sizes = [9, 1], strides = [1, 1]} : vector<9x49xf32> to vector<9x1xf32>
    %c0_51 = arith.constant 0 : index
    %c160 = arith.constant 160 : index
    %195 = vector.load %arg7[%c0_51, %c160] : memref<9x512xf32, #tpu.memory_space<vmem>>, vector<9x256xf32>
    %196 = vector.broadcast %194 : vector<9x1xf32> to vector<9x256xf32>
    %197 = arith.mulf %196, %195 : vector<9x256xf32>
    %198 = arith.addf %193, %197 : vector<9x256xf32>
    %199 = vector.extract_strided_slice %4 {offsets = [0, 45], sizes = [9, 1], strides = [1, 1]} : vector<9x49xf32> to vector<9x1xf32>
    %c0_52 = arith.constant 0 : index
    %c176 = arith.constant 176 : index
    %200 = vector.load %arg7[%c0_52, %c176] : memref<9x512xf32, #tpu.memory_space<vmem>>, vector<9x256xf32>
    %201 = vector.broadcast %199 : vector<9x1xf32> to vector<9x256xf32>
    %202 = arith.mulf %201, %200 : vector<9x256xf32>
    %203 = arith.addf %198, %202 : vector<9x256xf32>
    %204 = arith.addf %169, %203 : vector<9x256xf32>
    %205 = vector.extract_strided_slice %4 {offsets = [0, 4], sizes = [9, 1], strides = [1, 1]} : vector<9x49xf32> to vector<9x1xf32>
    %c0_53 = arith.constant 0 : index
    %c81 = arith.constant 81 : index
    %206 = vector.load %arg7[%c0_53, %c81] : memref<9x512xf32, #tpu.memory_space<vmem>>, vector<9x256xf32>
    %207 = vector.broadcast %205 : vector<9x1xf32> to vector<9x256xf32>
    %208 = arith.mulf %207, %206 : vector<9x256xf32>
    %209 = vector.extract_strided_slice %4 {offsets = [0, 11], sizes = [9, 1], strides = [1, 1]} : vector<9x49xf32> to vector<9x1xf32>
    %c0_54 = arith.constant 0 : index
    %c97 = arith.constant 97 : index
    %210 = vector.load %arg7[%c0_54, %c97] : memref<9x512xf32, #tpu.memory_space<vmem>>, vector<9x256xf32>
    %211 = vector.broadcast %209 : vector<9x1xf32> to vector<9x256xf32>
    %212 = arith.mulf %211, %210 : vector<9x256xf32>
    %213 = arith.addf %208, %212 : vector<9x256xf32>
    %214 = vector.extract_strided_slice %4 {offsets = [0, 18], sizes = [9, 1], strides = [1, 1]} : vector<9x49xf32> to vector<9x1xf32>
    %c0_55 = arith.constant 0 : index
    %c113 = arith.constant 113 : index
    %215 = vector.load %arg7[%c0_55, %c113] : memref<9x512xf32, #tpu.memory_space<vmem>>, vector<9x256xf32>
    %216 = vector.broadcast %214 : vector<9x1xf32> to vector<9x256xf32>
    %217 = arith.mulf %216, %215 : vector<9x256xf32>
    %218 = arith.addf %213, %217 : vector<9x256xf32>
    %219 = vector.extract_strided_slice %4 {offsets = [0, 25], sizes = [9, 1], strides = [1, 1]} : vector<9x49xf32> to vector<9x1xf32>
    %c0_56 = arith.constant 0 : index
    %c129 = arith.constant 129 : index
    %220 = vector.load %arg7[%c0_56, %c129] : memref<9x512xf32, #tpu.memory_space<vmem>>, vector<9x256xf32>
    %221 = vector.broadcast %219 : vector<9x1xf32> to vector<9x256xf32>
    %222 = arith.mulf %221, %220 : vector<9x256xf32>
    %223 = arith.addf %218, %222 : vector<9x256xf32>
    %224 = vector.extract_strided_slice %4 {offsets = [0, 32], sizes = [9, 1], strides = [1, 1]} : vector<9x49xf32> to vector<9x1xf32>
    %c0_57 = arith.constant 0 : index
    %c145 = arith.constant 145 : index
    %225 = vector.load %arg7[%c0_57, %c145] : memref<9x512xf32, #tpu.memory_space<vmem>>, vector<9x256xf32>
    %226 = vector.broadcast %224 : vector<9x1xf32> to vector<9x256xf32>
    %227 = arith.mulf %226, %225 : vector<9x256xf32>
    %228 = arith.addf %223, %227 : vector<9x256xf32>
    %229 = vector.extract_strided_slice %4 {offsets = [0, 39], sizes = [9, 1], strides = [1, 1]} : vector<9x49xf32> to vector<9x1xf32>
    %c0_58 = arith.constant 0 : index
    %c161 = arith.constant 161 : index
    %230 = vector.load %arg7[%c0_58, %c161] : memref<9x512xf32, #tpu.memory_space<vmem>>, vector<9x256xf32>
    %231 = vector.broadcast %229 : vector<9x1xf32> to vector<9x256xf32>
    %232 = arith.mulf %231, %230 : vector<9x256xf32>
    %233 = arith.addf %228, %232 : vector<9x256xf32>
    %234 = vector.extract_strided_slice %4 {offsets = [0, 46], sizes = [9, 1], strides = [1, 1]} : vector<9x49xf32> to vector<9x1xf32>
    %c0_59 = arith.constant 0 : index
    %c177 = arith.constant 177 : index
    %235 = vector.load %arg7[%c0_59, %c177] : memref<9x512xf32, #tpu.memory_space<vmem>>, vector<9x256xf32>
    %236 = vector.broadcast %234 : vector<9x1xf32> to vector<9x256xf32>
    %237 = arith.mulf %236, %235 : vector<9x256xf32>
    %238 = arith.addf %233, %237 : vector<9x256xf32>
    %c-1_i32 = arith.constant -1 : i32
    %239 = vector.broadcast %c-1_i32 : i32 to vector<1x256xi32>
    %240 = arith.cmpi sge, %38, %239 : vector<1x256xi32>
    %c15_i32_60 = arith.constant 15 : i32
    %241 = vector.broadcast %c15_i32_60 : i32 to vector<1x256xi32>
    %242 = arith.cmpi slt, %38, %241 : vector<1x256xi32>
    %243 = arith.andi %240, %242 : vector<1x256xi1>
    %cst_61 = arith.constant 0.000000e+00 : f32
    %244 = vector.shape_cast %243 : vector<1x256xi1> to vector<1x256xi1>
    %245 = vector.broadcast %244 : vector<1x256xi1> to vector<9x256xi1>
    %246 = vector.broadcast %cst_61 : f32 to vector<9x256xf32>
    %247 = arith.select %245, %238, %246 : vector<9x256xi1>, vector<9x256xf32>
    %248 = arith.addf %204, %247 : vector<9x256xf32>
    %249 = vector.extract_strided_slice %4 {offsets = [0, 5], sizes = [9, 1], strides = [1, 1]} : vector<9x49xf32> to vector<9x1xf32>
    %c0_62 = arith.constant 0 : index
    %c82 = arith.constant 82 : index
    %250 = vector.load %arg7[%c0_62, %c82] : memref<9x512xf32, #tpu.memory_space<vmem>>, vector<9x256xf32>
    %251 = vector.broadcast %249 : vector<9x1xf32> to vector<9x256xf32>
    %252 = arith.mulf %251, %250 : vector<9x256xf32>
    %253 = vector.extract_strided_slice %4 {offsets = [0, 12], sizes = [9, 1], strides = [1, 1]} : vector<9x49xf32> to vector<9x1xf32>
    %c0_63 = arith.constant 0 : index
    %c98 = arith.constant 98 : index
    %254 = vector.load %arg7[%c0_63, %c98] : memref<9x512xf32, #tpu.memory_space<vmem>>, vector<9x256xf32>
    %255 = vector.broadcast %253 : vector<9x1xf32> to vector<9x256xf32>
    %256 = arith.mulf %255, %254 : vector<9x256xf32>
    %257 = arith.addf %252, %256 : vector<9x256xf32>
    %258 = vector.extract_strided_slice %4 {offsets = [0, 19], sizes = [9, 1], strides = [1, 1]} : vector<9x49xf32> to vector<9x1xf32>
    %c0_64 = arith.constant 0 : index
    %c114 = arith.constant 114 : index
    %259 = vector.load %arg7[%c0_64, %c114] : memref<9x512xf32, #tpu.memory_space<vmem>>, vector<9x256xf32>
    %260 = vector.broadcast %258 : vector<9x1xf32> to vector<9x256xf32>
    %261 = arith.mulf %260, %259 : vector<9x256xf32>
    %262 = arith.addf %257, %261 : vector<9x256xf32>
    %263 = vector.extract_strided_slice %4 {offsets = [0, 26], sizes = [9, 1], strides = [1, 1]} : vector<9x49xf32> to vector<9x1xf32>
    %c0_65 = arith.constant 0 : index
    %c130 = arith.constant 130 : index
    %264 = vector.load %arg7[%c0_65, %c130] : memref<9x512xf32, #tpu.memory_space<vmem>>, vector<9x256xf32>
    %265 = vector.broadcast %263 : vector<9x1xf32> to vector<9x256xf32>
    %266 = arith.mulf %265, %264 : vector<9x256xf32>
    %267 = arith.addf %262, %266 : vector<9x256xf32>
    %268 = vector.extract_strided_slice %4 {offsets = [0, 33], sizes = [9, 1], strides = [1, 1]} : vector<9x49xf32> to vector<9x1xf32>
    %c0_66 = arith.constant 0 : index
    %c146 = arith.constant 146 : index
    %269 = vector.load %arg7[%c0_66, %c146] : memref<9x512xf32, #tpu.memory_space<vmem>>, vector<9x256xf32>
    %270 = vector.broadcast %268 : vector<9x1xf32> to vector<9x256xf32>
    %271 = arith.mulf %270, %269 : vector<9x256xf32>
    %272 = arith.addf %267, %271 : vector<9x256xf32>
    %273 = vector.extract_strided_slice %4 {offsets = [0, 40], sizes = [9, 1], strides = [1, 1]} : vector<9x49xf32> to vector<9x1xf32>
    %c0_67 = arith.constant 0 : index
    %c162 = arith.constant 162 : index
    %274 = vector.load %arg7[%c0_67, %c162] : memref<9x512xf32, #tpu.memory_space<vmem>>, vector<9x256xf32>
    %275 = vector.broadcast %273 : vector<9x1xf32> to vector<9x256xf32>
    %276 = arith.mulf %275, %274 : vector<9x256xf32>
    %277 = arith.addf %272, %276 : vector<9x256xf32>
    %278 = vector.extract_strided_slice %4 {offsets = [0, 47], sizes = [9, 1], strides = [1, 1]} : vector<9x49xf32> to vector<9x1xf32>
    %c0_68 = arith.constant 0 : index
    %c178 = arith.constant 178 : index
    %279 = vector.load %arg7[%c0_68, %c178] : memref<9x512xf32, #tpu.memory_space<vmem>>, vector<9x256xf32>
    %280 = vector.broadcast %278 : vector<9x1xf32> to vector<9x256xf32>
    %281 = arith.mulf %280, %279 : vector<9x256xf32>
    %282 = arith.addf %277, %281 : vector<9x256xf32>
    %c-2_i32 = arith.constant -2 : i32
    %283 = vector.broadcast %c-2_i32 : i32 to vector<1x256xi32>
    %284 = arith.cmpi sge, %38, %283 : vector<1x256xi32>
    %c14_i32 = arith.constant 14 : i32
    %285 = vector.broadcast %c14_i32 : i32 to vector<1x256xi32>
    %286 = arith.cmpi slt, %38, %285 : vector<1x256xi32>
    %287 = arith.andi %284, %286 : vector<1x256xi1>
    %cst_69 = arith.constant 0.000000e+00 : f32
    %288 = vector.shape_cast %287 : vector<1x256xi1> to vector<1x256xi1>
    %289 = vector.broadcast %288 : vector<1x256xi1> to vector<9x256xi1>
    %290 = vector.broadcast %cst_69 : f32 to vector<9x256xf32>
    %291 = arith.select %289, %282, %290 : vector<9x256xi1>, vector<9x256xf32>
    %292 = arith.addf %248, %291 : vector<9x256xf32>
    %293 = vector.extract_strided_slice %4 {offsets = [0, 6], sizes = [9, 1], strides = [1, 1]} : vector<9x49xf32> to vector<9x1xf32>
    %c0_70 = arith.constant 0 : index
    %c83 = arith.constant 83 : index
    %294 = vector.load %arg7[%c0_70, %c83] : memref<9x512xf32, #tpu.memory_space<vmem>>, vector<9x256xf32>
    %295 = vector.broadcast %293 : vector<9x1xf32> to vector<9x256xf32>
    %296 = arith.mulf %295, %294 : vector<9x256xf32>
    %297 = vector.extract_strided_slice %4 {offsets = [0, 13], sizes = [9, 1], strides = [1, 1]} : vector<9x49xf32> to vector<9x1xf32>
    %c0_71 = arith.constant 0 : index
    %c99 = arith.constant 99 : index
    %298 = vector.load %arg7[%c0_71, %c99] : memref<9x512xf32, #tpu.memory_space<vmem>>, vector<9x256xf32>
    %299 = vector.broadcast %297 : vector<9x1xf32> to vector<9x256xf32>
    %300 = arith.mulf %299, %298 : vector<9x256xf32>
    %301 = arith.addf %296, %300 : vector<9x256xf32>
    %302 = vector.extract_strided_slice %4 {offsets = [0, 20], sizes = [9, 1], strides = [1, 1]} : vector<9x49xf32> to vector<9x1xf32>
    %c0_72 = arith.constant 0 : index
    %c115 = arith.constant 115 : index
    %303 = vector.load %arg7[%c0_72, %c115] : memref<9x512xf32, #tpu.memory_space<vmem>>, vector<9x256xf32>
    %304 = vector.broadcast %302 : vector<9x1xf32> to vector<9x256xf32>
    %305 = arith.mulf %304, %303 : vector<9x256xf32>
    %306 = arith.addf %301, %305 : vector<9x256xf32>
    %307 = vector.extract_strided_slice %4 {offsets = [0, 27], sizes = [9, 1], strides = [1, 1]} : vector<9x49xf32> to vector<9x1xf32>
    %c0_73 = arith.constant 0 : index
    %c131 = arith.constant 131 : index
    %308 = vector.load %arg7[%c0_73, %c131] : memref<9x512xf32, #tpu.memory_space<vmem>>, vector<9x256xf32>
    %309 = vector.broadcast %307 : vector<9x1xf32> to vector<9x256xf32>
    %310 = arith.mulf %309, %308 : vector<9x256xf32>
    %311 = arith.addf %306, %310 : vector<9x256xf32>
    %312 = vector.extract_strided_slice %4 {offsets = [0, 34], sizes = [9, 1], strides = [1, 1]} : vector<9x49xf32> to vector<9x1xf32>
    %c0_74 = arith.constant 0 : index
    %c147 = arith.constant 147 : index
    %313 = vector.load %arg7[%c0_74, %c147] : memref<9x512xf32, #tpu.memory_space<vmem>>, vector<9x256xf32>
    %314 = vector.broadcast %312 : vector<9x1xf32> to vector<9x256xf32>
    %315 = arith.mulf %314, %313 : vector<9x256xf32>
    %316 = arith.addf %311, %315 : vector<9x256xf32>
    %317 = vector.extract_strided_slice %4 {offsets = [0, 41], sizes = [9, 1], strides = [1, 1]} : vector<9x49xf32> to vector<9x1xf32>
    %c0_75 = arith.constant 0 : index
    %c163 = arith.constant 163 : index
    %318 = vector.load %arg7[%c0_75, %c163] : memref<9x512xf32, #tpu.memory_space<vmem>>, vector<9x256xf32>
    %319 = vector.broadcast %317 : vector<9x1xf32> to vector<9x256xf32>
    %320 = arith.mulf %319, %318 : vector<9x256xf32>
    %321 = arith.addf %316, %320 : vector<9x256xf32>
    %322 = vector.extract_strided_slice %4 {offsets = [0, 48], sizes = [9, 1], strides = [1, 1]} : vector<9x49xf32> to vector<9x1xf32>
    %c0_76 = arith.constant 0 : index
    %c179 = arith.constant 179 : index
    %323 = vector.load %arg7[%c0_76, %c179] : memref<9x512xf32, #tpu.memory_space<vmem>>, vector<9x256xf32>
    %324 = vector.broadcast %322 : vector<9x1xf32> to vector<9x256xf32>
    %325 = arith.mulf %324, %323 : vector<9x256xf32>
    %326 = arith.addf %321, %325 : vector<9x256xf32>
    %c-3_i32 = arith.constant -3 : i32
    %327 = vector.broadcast %c-3_i32 : i32 to vector<1x256xi32>
    %328 = arith.cmpi sge, %38, %327 : vector<1x256xi32>
    %c13_i32 = arith.constant 13 : i32
    %329 = vector.broadcast %c13_i32 : i32 to vector<1x256xi32>
    %330 = arith.cmpi slt, %38, %329 : vector<1x256xi32>
    %331 = arith.andi %328, %330 : vector<1x256xi1>
    %cst_77 = arith.constant 0.000000e+00 : f32
    %332 = vector.shape_cast %331 : vector<1x256xi1> to vector<1x256xi1>
    %333 = vector.broadcast %332 : vector<1x256xi1> to vector<9x256xi1>
    %334 = vector.broadcast %cst_77 : f32 to vector<9x256xf32>
    %335 = arith.select %333, %326, %334 : vector<9x256xi1>, vector<9x256xf32>
    %336 = arith.addf %292, %335 : vector<9x256xf32>
    %337 = vector.extract_strided_slice %336 {offsets = [0, 0], sizes = [3, 256], strides = [1, 1]} : vector<9x256xf32> to vector<3x256xf32>
    %338 = vector.extract_strided_slice %336 {offsets = [3, 0], sizes = [3, 256], strides = [1, 1]} : vector<9x256xf32> to vector<3x256xf32>
    %339 = arith.addf %337, %338 : vector<3x256xf32>
    %340 = vector.extract_strided_slice %336 {offsets = [6, 0], sizes = [3, 256], strides = [1, 1]} : vector<9x256xf32> to vector<3x256xf32>
    %341 = arith.addf %339, %340 : vector<3x256xf32>
    %342 = arith.negf %341 : vector<3x256xf32>
    %343 = math.exp %342 : vector<3x256xf32>
    %cst_78 = arith.constant 1.000000e+00 : f32
    %344 = vector.broadcast %cst_78 : f32 to vector<3x256xf32>
    %345 = arith.addf %344, %343 : vector<3x256xf32>
    %346 = arith.divf %344, %345 : vector<3x256xf32>
    %347 = arith.mulf %19, %346 : vector<3x256xf32>
    %348 = vector.shape_cast %1 : vector<8x256xf32> to vector<1x8x256xf32>
    %349 = vector.shape_cast %347 : vector<3x256xf32> to vector<3x1x256xf32>
    %350 = vector.broadcast %348 : vector<1x8x256xf32> to vector<3x8x256xf32>
    %351 = vector.broadcast %349 : vector<3x1x256xf32> to vector<3x8x256xf32>
    %352 = arith.mulf %350, %351 : vector<3x8x256xf32>
    %353 = vector.shape_cast %352 : vector<3x8x256xf32> to vector<24x256xf32>
    %cst_79 = arith.constant dense<0.000000e+00> : vector<24xf32>
    %354 = vector.multi_reduction <add>, %353, %cst_79 [1] : vector<24x256xf32> to vector<24xf32>
    %355 = vector.shape_cast %354 : vector<24xf32> to vector<24x1xf32>
    %cst_80 = arith.constant 3.906250e-03 : f32
    %356 = vector.broadcast %cst_80 : f32 to vector<24x1xf32>
    %357 = arith.mulf %355, %356 : vector<24x1xf32>
    %358 = vector.broadcast %357 : vector<24x1xf32> to vector<24x256xf32>
    %359 = arith.subf %353, %358 : vector<24x256xf32>
    %360 = arith.mulf %359, %359 : vector<24x256xf32>
    %cst_81 = arith.constant dense<0.000000e+00> : vector<24xf32>
    %361 = vector.multi_reduction <add>, %360, %cst_81 [1] : vector<24x256xf32> to vector<24xf32>
    %362 = vector.shape_cast %361 : vector<24xf32> to vector<24x1xf32>
    %cst_82 = arith.constant 3.906250e-03 : f32
    %363 = vector.broadcast %cst_82 : f32 to vector<24x1xf32>
    %364 = arith.mulf %362, %363 : vector<24x1xf32>
    %cst_83 = arith.constant 9.99999974E-6 : f32
    %365 = vector.broadcast %cst_83 : f32 to vector<24x1xf32>
    %366 = arith.addf %364, %365 : vector<24x1xf32>
    %367 = math.rsqrt %366 : vector<24x1xf32>
    %368 = vector.broadcast %367 : vector<24x1xf32> to vector<24x256xf32>
    %369 = arith.mulf %359, %368 : vector<24x256xf32>
    %370 = vector.shape_cast %369 : vector<24x256xf32> to vector<3x8x256xf32>
    %371 = vector.extract_strided_slice %370 {offsets = [0, 0, 0], sizes = [1, 8, 256], strides = [1, 1, 1]} : vector<3x8x256xf32> to vector<1x8x256xf32>
    %372 = vector.shape_cast %371 : vector<1x8x256xf32> to vector<8x256xf32>
    %373 = vector.extract_strided_slice %370 {offsets = [1, 0, 0], sizes = [1, 8, 256], strides = [1, 1, 1]} : vector<3x8x256xf32> to vector<1x8x256xf32>
    %374 = vector.shape_cast %373 : vector<1x8x256xf32> to vector<8x256xf32>
    %375 = arith.addf %372, %374 : vector<8x256xf32>
    %376 = vector.extract_strided_slice %370 {offsets = [2, 0, 0], sizes = [1, 8, 256], strides = [1, 1, 1]} : vector<3x8x256xf32> to vector<1x8x256xf32>
    %377 = vector.shape_cast %376 : vector<1x8x256xf32> to vector<8x256xf32>
    %378 = arith.addf %375, %377 : vector<8x256xf32>
    %379 = vector.broadcast %5 : vector<8x1xf32> to vector<8x256xf32>
    %380 = arith.mulf %378, %379 : vector<8x256xf32>
    %cst_84 = arith.constant 3.000000e+00 : f32
    %381 = vector.broadcast %cst_84 : f32 to vector<8x1xf32>
    %382 = arith.mulf %381, %6 : vector<8x1xf32>
    %383 = vector.broadcast %382 : vector<8x1xf32> to vector<8x256xf32>
    %384 = arith.addf %380, %383 : vector<8x256xf32>
    %cst_85 = arith.constant 0.000000e+00 : f32
    %385 = vector.broadcast %cst_85 : f32 to vector<8x256xf32>
    %386 = arith.maximumf %384, %385 : vector<8x256xf32>
    %c0_86 = arith.constant 0 : index
    %c0_87 = arith.constant 0 : index
    %c0_88 = arith.constant 0 : index
    %387 = vector.load %arg6[%c0_86, %c0_87, %c0_88] : memref<1x8x256xf32, #tpu.memory_space<vmem>>, vector<1x8x256xf32>
    %388 = vector.shape_cast %387 : vector<1x8x256xf32> to vector<8x256xf32>
    %389 = vector.shape_cast %386 : vector<8x256xf32> to vector<1x8x256xf32>
    tpu.vector_store %arg6[%c0_86, %c0_87, %c0_88], %389 {strides = array<i32>} : memref<1x8x256xf32, #tpu.memory_space<vmem>>, vector<1x8x256xf32>,
    return
  }
  func.func @transform_0(%arg0: i32) -> (i32, i32, i32) {
    %c0_i32 = arith.constant 0 : i32
    %c0_i32_0 = arith.constant 0 : i32
    %c0_i32_1 = arith.constant 0 : i32
    return %arg0, %c0_i32, %c0_i32_0 : i32, i32, i32
  }
  func.func @transform_1(%arg0: i32) -> (i32, i32, i32) {
    %c0_i32 = arith.constant 0 : i32
    %c0_i32_0 = arith.constant 0 : i32
    %c0_i32_1 = arith.constant 0 : i32
    return %arg0, %c0_i32, %c0_i32_0 : i32, i32, i32
  }
  func.func @transform_2(%arg0: i32) -> (i32, i32) {
    %c0_i32 = arith.constant 0 : i32
    %c0_i32_0 = arith.constant 0 : i32
    %c0_i32_1 = arith.constant 0 : i32
    return %c0_i32, %c0_i32_0 : i32, i32
  }
  func.func @transform_3(%arg0: i32) -> (i32, i32) {
    %c0_i32 = arith.constant 0 : i32
    %c0_i32_0 = arith.constant 0 : i32
    %c0_i32_1 = arith.constant 0 : i32
    return %c0_i32, %c0_i32_0 : i32, i32
  }
  func.func @transform_4(%arg0: i32) -> (i32, i32) {
    %c0_i32 = arith.constant 0 : i32
    %c0_i32_0 = arith.constant 0 : i32
    %c0_i32_1 = arith.constant 0 : i32
    return %c0_i32, %c0_i32_0 : i32, i32
  }
  func.func @transform_5(%arg0: i32) -> (i32, i32, i32) {
    %c0_i32 = arith.constant 0 : i32
    %c0_i32_0 = arith.constant 0 : i32
    %c0_i32_1 = arith.constant 0 : i32
    return %arg0, %c0_i32, %c0_i32_0 : i32, i32, i32
  }
}

</mosaic_0001>

<llo_original>
// kernel: class_in_block_forward.1
$region0: #{class_in_block_forward.1}
  #allocation0 [shape = 'u32[]', space=smem, size = 0x4, offset = 0x4, fixed_abs, tag = 'smem constant byte address 0x4 - core index']
  #allocation1 [shape = 'u32[72,128]{1,0:T(1,128)}', space=vmem, size = 0x9000, scoped, tag = 'internal scratch']
  #allocation2 [shape = 'f32[9,512]{1,0:T(8,128)}', space=vmem, size = 0x8000, scoped, tag = 'scratch operand']
  %s0 = inlined_call_operand.vmem [shape: f32[2,8,256], index: 0, kind: input, shape index: {}]
  %s1 = inlined_call_operand.vmem [shape: f32[2,5,256], index: 1, kind: input, shape index: {}]
  %s2 = inlined_call_operand.vmem [shape: f32[9,49], index: 2, kind: input, shape index: {}]
  %s3 = inlined_call_operand.vmem [shape: f32[8,1], index: 3, kind: input, shape index: {}]
  %s4 = inlined_call_operand.vmem [shape: f32[8,1], index: 4, kind: input, shape index: {}]
  %s5 = inlined_call_operand.vmem [shape: f32[2,8,256], index: 5, kind: output, shape index: {}]
  %s6 = sld [smem:[#allocation0]]
  $region53: #{class_in_block_forward.1} parent=0
    _
  %s8 = ssub.s32 1, %s6
  %s9 = scalar_select 0, %s8, %s6
  loop: start=0, step=1, limit=4
  $region2: #{class_in_block_forward.1} parent=0 // loop_pre_header
    _
  $region3: #{class_in_block_forward.1} parent=0 // loop_header
    %s11 = sphi 0, %s15
    %p12 = scmp.ge.s32.totalorder %s11, 4
    %s21 = sphi 0, %s23
    %s24 = sphi 0, %s21
    %s25 = sphi 0, %s24
    %s41 = sphi 0, %s25
    %s47 = sphi 0, %s49
    %s50 = sphi 0, %s47
    %s51 = sphi 0, %s50
    %s67 = sphi 0, %s51
    %s71 = sphi 0, %s71
    %s73 = sphi 0, %s71
    %s74 = sphi 0, %s73
    %s88 = sphi 0, %s74
    %s92 = sphi 0, %s92
    %s94 = sphi 0, %s92
    %s95 = sphi 0, %s94
    %s109 = sphi 0, %s95
    %s113 = sphi 0, %s113
    %s115 = sphi 0, %s113
    %s116 = sphi 0, %s115
    %s130 = sphi 0, %s116
    %s136 = sphi 0, %s138
    %s139 = sphi 0, %s136
    %s140 = sphi 0, %s139
    %s156 = sphi 0, %s140
  $region4: #{class_in_block_forward.1} parent=0 // loop_header_branch
    %14 = sbr.rel (%p12) target = $region8
  $region5: #{class_in_block_forward.1} parent=0 // loop_body
    %s16 = ssub.s32 %s11, 1
    %s17 = ssub.s32 %s11, 2
    %s18 = sadd.s32 %s11, 1
    %s19 = ssub.s32 %s11, %s18
    %p20 = scmp.eq.s32.totalorder %s19, 0
    %s22 = sadd.s32 %s21, 1
    %s23 = scalar_select %p20, %s21, %s22
    %p26 = pneg %p20
    %p27 = scmp.eq.s32.totalorder %s11, 1
    %p28 = por %p26, %p27
    %p29 = scmp.ne.s32.totalorder %s21, %s24
    %p30 = scmp.eq.s32.totalorder %s11, 0
    %p31 = por %p29, %p30
    %p32 = scmp.ne.s32.totalorder %s21, %s24
    %p33 = scmp.eq.s32.totalorder %s16, 1
    %p34 = por %p32, %p33
    %p35 = scmp.ne.s32.totalorder %s24, %s25
    %p36 = scmp.eq.s32.totalorder %s16, 0
    %p37 = por %p35, %p36
    %p38 = scmp.ne.s32.totalorder %s24, %s25
    %p39 = scmp.eq.s32.totalorder %s17, 1
    %p40 = por %p38, %p39
    %p42 = scmp.ne.s32.totalorder %s25, %s41
    %p43 = scmp.eq.s32.totalorder %s17, 0
    %p44 = por %p42, %p43
    %s45 = ssub.s32 %s11, %s18
    %p46 = scmp.eq.s32.totalorder %s45, 0
    %s48 = sadd.s32 %s47, 1
    %s49 = scalar_select %p46, %s47, %s48
    %p52 = pneg %p46
    %p53 = scmp.eq.s32.totalorder %s11, 1
    %p54 = por %p52, %p53
    %p55 = scmp.ne.s32.totalorder %s47, %s50
    %p56 = scmp.eq.s32.totalorder %s11, 0
    %p57 = por %p55, %p56
    %p58 = scmp.ne.s32.totalorder %s47, %s50
    %p59 = scmp.eq.s32.totalorder %s16, 1
    %p60 = por %p58, %p59
    %p61 = scmp.ne.s32.totalorder %s50, %s51
    %p62 = scmp.eq.s32.totalorder %s16, 0
    %p63 = por %p61, %p62
    %p64 = scmp.ne.s32.totalorder %s50, %s51
    %p65 = scmp.eq.s32.totalorder %s17, 1
    %p66 = por %p64, %p65
    %p68 = scmp.ne.s32.totalorder %s51, %s67
    %p69 = scmp.eq.s32.totalorder %s17, 0
    %p70 = por %p68, %p69
    %s72 = sadd.s32 %s71, 1
    %p75 = scmp.eq.s32.totalorder %s11, 1
    %p76 = scmp.ne.s32.totalorder %s71, %s73
    %p77 = scmp.eq.s32.totalorder %s11, 0
    %p78 = por %p76, %p77
    %p79 = scmp.ne.s32.totalorder %s71, %s73
    %p80 = scmp.eq.s32.totalorder %s16, 1
    %p81 = por %p79, %p80
    %p82 = scmp.ne.s32.totalorder %s73, %s74
    %p83 = scmp.eq.s32.totalorder %s16, 0
    %p84 = por %p82, %p83
    %p85 = scmp.ne.s32.totalorder %s73, %s74
    %p86 = scmp.eq.s32.totalorder %s17, 1
    %p87 = por %p85, %p86
    %p89 = scmp.ne.s32.totalorder %s74, %s88
    %p90 = scmp.eq.s32.totalorder %s17, 0
    %p91 = por %p89, %p90
    %s93 = sadd.s32 %s92, 1
    %p96 = scmp.eq.s32.totalorder %s11, 1
    %p97 = scmp.ne.s32.totalorder %s92, %s94
    %p98 = scmp.eq.s32.totalorder %s11, 0
    %p99 = por %p97, %p98
    %p100 = scmp.ne.s32.totalorder %s92, %s94
    %p101 = scmp.eq.s32.totalorder %s16, 1
    %p102 = por %p100, %p101
    %p103 = scmp.ne.s32.totalorder %s94, %s95
    %p104 = scmp.eq.s32.totalorder %s16, 0
    %p105 = por %p103, %p104
    %p106 = scmp.ne.s32.totalorder %s94, %s95
    %p107 = scmp.eq.s32.totalorder %s17, 1
    %p108 = por %p106, %p107
    %p110 = scmp.ne.s32.totalorder %s95, %s109
    %p111 = scmp.eq.s32.totalorder %s17, 0
    %p112 = por %p110, %p111
    %s114 = sadd.s32 %s113, 1
    %p117 = scmp.eq.s32.totalorder %s11, 1
    %p118 = scmp.ne.s32.totalorder %s113, %s115
    %p119 = scmp.eq.s32.totalorder %s11, 0
    %p120 = por %p118, %p119
    %p121 = scmp.ne.s32.totalorder %s113, %s115
    %p122 = scmp.eq.s32.totalorder %s16, 1
    %p123 = por %p121, %p122
    %p124 = scmp.ne.s32.totalorder %s115, %s116
    %p125 = scmp.eq.s32.totalorder %s16, 0
    %p126 = por %p124, %p125
    %p127 = scmp.ne.s32.totalorder %s115, %s116
    %p128 = scmp.eq.s32.totalorder %s17, 1
    %p129 = por %p127, %p128
    %p131 = scmp.ne.s32.totalorder %s116, %s130
    %p132 = scmp.eq.s32.totalorder %s17, 0
    %p133 = por %p131, %p132
    %s134 = ssub.s32 %s11, %s18
    %p135 = scmp.eq.s32.totalorder %s134, 0
    %s137 = sadd.s32 %s136, 1
    %s138 = scalar_select %p135, %s136, %s137
    %p141 = pneg %p135
    %p142 = scmp.eq.s32.totalorder %s11, 1
    %p143 = por %p141, %p142
    %p144 = scmp.ne.s32.totalorder %s136, %s139
    %p145 = scmp.eq.s32.totalorder %s11, 0
    %p146 = por %p144, %p145
    %p147 = scmp.ne.s32.totalorder %s136, %s139
    %p148 = scmp.eq.s32.totalorder %s16, 1
    %p149 = por %p147, %p148
    %p150 = scmp.ne.s32.totalorder %s139, %s140
    %p151 = scmp.eq.s32.totalorder %s16, 0
    %p152 = por %p150, %p151
    %p153 = scmp.ne.s32.totalorder %s139, %s140
    %p154 = scmp.eq.s32.totalorder %s17, 1
    %p155 = por %p153, %p154
    %p157 = scmp.ne.s32.totalorder %s140, %s156
    %p158 = scmp.eq.s32.totalorder %s17, 0
    %p159 = por %p157, %p158
    %p160 = scmp.le.s32.totalorder 1, %s11
    %p161 = scmp.lt.s32.totalorder %s11, 3
    %p162 = pnand %p160, %p161
    %p163 = pneg %p162
    // Predicated region
    $region9: #{class_in_block_forward.1} parent=5 // pred_check
      _
    $region10: #{class_in_block_forward.1} parent=5 // pred_check_branch
      %165 = sbr.rel (%p162) target = $region12
    $region11: #{class_in_block_forward.1} parent=5 // pred_region
      %s166 = ssub.s32 %s11, 1
      // Predicated region
      $region13: #{class_in_block_forward.1} parent=11 // pred_check
        %p167 = pneg %p84
      $region14: #{class_in_block_forward.1} parent=11 // pred_check_branch
        %169 = sbr.rel (%p167) target = $region16
      $region15: #{class_in_block_forward.1} parent=11 // pred_region
        _
      $region16: #{class_in_block_forward.1} parent=11 // pred_fallthru
        _
      // Predicated region
      $region17: #{class_in_block_forward.1} parent=11 // pred_check
        %p170 = pneg %p105
      $region18: #{class_in_block_forward.1} parent=11 // pred_check_branch
        %172 = sbr.rel (%p170) target = $region20
      $region19: #{class_in_block_forward.1} parent=11 // pred_region
        _
      $region20: #{class_in_block_forward.1} parent=11 // pred_fallthru
        _
      // Predicated region
      $region21: #{class_in_block_forward.1} parent=11 // pred_check
        %p173 = pneg %p126
      $region22: #{class_in_block_forward.1} parent=11 // pred_check_branch
        %175 = sbr.rel (%p173) target = $region24
      $region23: #{class_in_block_forward.1} parent=11 // pred_region
        _
      $region24: #{class_in_block_forward.1} parent=11 // pred_fallthru
        _
    $region12: #{class_in_block_forward.1} parent=5 // pred_fallthru
      _
    %p176 = scmp.lt.s32.totalorder %s11, 2
    // Predicated region
    $region25: #{class_in_block_forward.1} parent=5 // pred_check
      %p177 = pneg %p176
    $region26: #{class_in_block_forward.1} parent=5 // pred_check_branch
      %179 = sbr.rel (%p177) target = $region28
    $region27: #{class_in_block_forward.1} parent=5 // pred_region
      // Predicated region
      $region29: #{class_in_block_forward.1} parent=27 // pred_check
        %p180 = pneg %p31
      $region30: #{class_in_block_forward.1} parent=27 // pred_check_branch
        %182 = sbr.rel (%p180) target = $region32
      $region31: #{class_in_block_forward.1} parent=27 // pred_region
        %p183 = scmp.lt.s32.totalorder %s11, 1
        %s184 = scalar_select %p183, %s11, 1
        %s185 = smul.addr %s184, 2
        %s186 = smul.addr %s185, 8
        %s187 = scalar_lea.vmem %s0, %s186
      $region32: #{class_in_block_forward.1} parent=27 // pred_fallthru
        _
      // Predicated region
      $region33: #{class_in_block_forward.1} parent=27 // pred_check
        %p188 = pneg %p57
      $region34: #{class_in_block_forward.1} parent=27 // pred_check_branch
        %190 = sbr.rel (%p188) target = $region36
      $region35: #{class_in_block_forward.1} parent=27 // pred_region
        %p191 = scmp.lt.s32.totalorder %s11, 1
        %s192 = scalar_select %p191, %s11, 1
        %s193 = smul.addr %s192, 2
        %s194 = smul.addr %s193, 8
        %s195 = scalar_lea.vmem %s1, %s194
      $region36: #{class_in_block_forward.1} parent=27 // pred_fallthru
        _
    $region28: #{class_in_block_forward.1} parent=5 // pred_fallthru
      _
    %p196 = scmp.le.s32.totalorder 1, %s11
    %p197 = scmp.lt.s32.totalorder %s11, 3
    %p198 = pnand %p196, %p197
    %p199 = pneg %p198
    // Predicated region
    $region37: #{class_in_block_forward.1} parent=5 // pred_check
      _
    $region38: #{class_in_block_forward.1} parent=5 // pred_check_branch
      %201 = sbr.rel (%p198) target = $region40
    $region39: #{class_in_block_forward.1} parent=5 // pred_region
      %s202 = ssub.s32 %s11, 1
      %p203 = scmp.lt.s32.totalorder %s16, 1
      %s204 = scalar_select %p203, %s16, 1
      %s205 = smul.addr %s204, 2
      %s206 = smul.addr %s205, 8
      %s207 = scalar_lea.vmem %s0, %s206
      %p208 = pneg %p37
      %p209 = pneg %p34
      %p210 = scmp.lt.s32.totalorder %s16, 1
      %s211 = scalar_select %p210, %s16, 1
      %s212 = smul.addr %s211, 2
      %s213 = smul.addr %s212, 8
      %s214 = scalar_lea.vmem %s1, %s213
      %p215 = pneg %p63
      %p216 = pneg %p60
      %p217 = pneg %p84
      %p218 = pneg %p81
      %p219 = pneg %p105
      %p220 = pneg %p102
      %p221 = pneg %p126
      %p222 = pneg %p123
      %p223 = pneg %p152
      %p224 = pneg %p149
      %p225 = scmp.lt.s32.totalorder %s16, 1
      %s226 = scalar_select %p225, %s16, 1
      %s227 = smul.addr %s226, 2
      %s228 = smul.addr %s227, 8
      %s229 = scalar_lea.vmem %s5, %s228
      %p230 = scmp.lt.s32.totalorder %s16, 1
      %s231 = scalar_select %p230, %s16, 1
      %s232 = smul.addr %s231, 2
      %s233 = smul.addr %s232, 8
      %s234 = scalar_lea.vmem %s0, %s233
      %p235 = scmp.lt.s32.totalorder %s16, 1
      %s236 = scalar_select %p235, %s16, 1
      %s237 = smul.addr %s236, 2
      %s238 = smul.addr %s237, 8
      %s239 = scalar_lea.vmem %s1, %s238
      %p240 = scmp.lt.s32.totalorder %s16, 1
      %s241 = scalar_select %p240, %s16, 1
      %s242 = smul.addr %s241, 2
      %s243 = smul.addr %s242, 8
      %s244 = scalar_lea.vmem %s5, %s243
      %v245 = vld [vmem:[%s234] sm:$0xff]
      %v246 = vld [vmem:[%s234 + $0x8] sm:$0xff]
      %v247 = vld [vmem:[%s239] sm:$0x1f]
      %v248 = vld [vmem:[%s239 + $0x8] sm:$0x1f]
      %v249 = vld [vmem:[%s2] sm:$0xff]
      %v250 = vld [vmem:[%s2 + $0x8] sm:$0x1]
      %v251 = vld [vmem:[%s3] sm:$0xff]
      %v252 = vld [vmem:[%s4] sm:$0xff]
      %vm253 = vcmask 1044480
      %v254 = vsel %vm253, %v247, -inf
      %v255 = vrot.slane %v254, 4
      %v256 = vmax.f32 %v254, %v255
      %v257 = vrot.slane %v256, 2
      %v258 = vmax.f32 %v256, %v257
      %v259 = vrot.slane %v258, 1
      %v260 = vmax.f32 %v258, %v259
      %v261 = vsel %vm253, %v248, -inf
      %v262 = vrot.slane %v261, 4
      %v263 = vmax.f32 %v261, %v262
      %v264 = vrot.slane %v263, 2
      %v265 = vmax.f32 %v263, %v264
      %v266 = vrot.slane %v265, 1
      %v267 = vmax.f32 %v265, %v266
      %v268 = vsub.f32 %v247, %v260
      %v269 = vsub.f32 %v248, %v267
      %v270 = vmul.f32 %v268, 1.442695
      %v271 = vpow.pop %v270
      %v272 = vmul.f32 %v269, 1.442695
      %v273 = vpow.pop %v272
      %v274 = vsel %vm253, %v271, 0.0
      %v275 = vrot.slane %v274, 4
      %v276 = vadd.f32 %v274, %v275
      %v277 = vrot.slane %v276, 2
      %v278 = vadd.f32 %v276, %v277
      %v279 = vrot.slane %v278, 1
      %v280 = vadd.f32 %v278, %v279
      %v281 = vsel %vm253, %v273, 0.0
      %v282 = vrot.slane %v281, 4
      %v283 = vadd.f32 %v281, %v282
      %v284 = vrot.slane %v283, 2
      %v285 = vadd.f32 %v283, %v284
      %v286 = vrot.slane %v285, 1
      %v287 = vadd.f32 %v285, %v286
      %v288 = vrcp.pop %v280
      %v289 = vmul.f32 %v280, %v288
      %v290 = vsub.f32 1.0, %v289
      %v291 = vmul.f32 %v288, %v290
      %v292 = vadd.f32 %v288, %v291
      %vm293 = vweird.f32 %v280
      %vm294 = vweird.f32 %v288
      %vm295 = vmor %vm293, %vm294
      %v296 = vsel %vm295, %v288, %v292
      %v297 = vand.u32 2147483647, %v280
      %vm298 = vcmp.eq.f32.partialorder %v297, 8.507059e+37
      %v299 = vand.u32 %v280, 2147483648
      %v300 = vor.u32 1.1754944e-38, %v299
      %v301 = vsel %vm298, %v300, %v296
      %v302 = vmul.f32 %v271, %v301
      %v303 = vrcp.pop %v287
      %v304 = vmul.f32 %v287, %v303
      %v305 = vsub.f32 1.0, %v304
      %v306 = vmul.f32 %v303, %v305
      %v307 = vadd.f32 %v303, %v306
      %vm308 = vweird.f32 %v287
      %vm309 = vweird.f32 %v303
      %vm310 = vmor %vm308, %vm309
      %v311 = vsel %vm310, %v303, %v307
      %v312 = vand.u32 2147483647, %v287
      %vm313 = vcmp.eq.f32.partialorder %v312, 8.507059e+37
      %v314 = vand.u32 %v287, 2147483648
      %v315 = vor.u32 1.1754944e-38, %v314
      %v316 = vsel %vm313, %v315, %v311
      %v317 = vmul.f32 %v273, %v316
      %v320 = vrot.slane %v302, 1
      %v321 = vrot.slane %v317, 1
      %v324 = vrot.slane %v302, 2
      %v325 = vrot.slane %v317, 2
      %vm328 = vcmask 1040384
      %v329 = vsel %vm328, %v302, %v320
      %v330 = vsel %vm328, %v317, %v321
      %vm331 = vcmask 1041408
      %v332 = vsel %vm331, %v329, %v324
      %v333 = vsel %vm331, %v330, %v325
      %v334 = vrot.slane %v245, 4
      %v335 = vadd.f32 %v245, %v334
      %v336 = vrot.slane %v335, 2
      %v337 = vadd.f32 %v335, %v336
      %v338 = vrot.slane %v337, 1
      %v339 = vadd.f32 %v337, %v338
      %v340 = vrot.slane %v246, 4
      %v341 = vadd.f32 %v246, %v340
      %v342 = vrot.slane %v341, 2
      %v343 = vadd.f32 %v341, %v342
      %v344 = vrot.slane %v343, 1
      %v345 = vadd.f32 %v343, %v344
      %v346 = vmul.f32 %v339, 0.125
      %v347 = vmul.f32 %v345, 0.125
      %v348 = vrot.slane %v245, 4
      %v349 = vmax.f32 %v245, %v348
      %v350 = vrot.slane %v349, 2
      %v351 = vmax.f32 %v349, %v350
      %v352 = vrot.slane %v351, 1
      %v353 = vmax.f32 %v351, %v352
      %v354 = vrot.slane %v246, 4
      %v355 = vmax.f32 %v246, %v354
      %v356 = vrot.slane %v355, 2
      %v357 = vmax.f32 %v355, %v356
      %v358 = vrot.slane %v357, 1
      %v359 = vmax.f32 %v357, %v358
      %v360 = vmul.f32 %v332, %v346
      %v361 = vmul.f32 %v333, %v347
      %v362 = vmul.f32 %v332, %v353
      %v363 = vmul.f32 %v333, %v359
      %v366 = vrot.slane %v362, 5
      %v367 = vrot.slane %v363, 5
      %v372 = vrot.slane %v332, 2
      %v373 = vrot.slane %v333, 2
      %vm376 = vcmask 1042432
      %v377 = vsel %vm376, %v360, %v366
      %v378 = vsel %vm376, %v361, %v367
      %vm379 = vcmask 1045504
      %v380 = vsel %vm379, %v377, %v372
      %v381 = vsel %vm379, %v378, %v373
      %382 = vst [vmem:[#allocation2] sm:$0xff] 0.0
      %383 = vst [vmem:[#allocation2 + $0x20] sm:$0x1] 0.0
      %384 = vst [vmem:[#allocation2 + $0x8] sm:$0xff] %v380
      %385 = vst [vmem:[#allocation2 + $0x10] sm:$0xff] %v381
      %386 = vst [vmem:[#allocation2 + $0x28] sm:$0x1] %v372
      %387 = vst [vmem:[#allocation2 + $0x30] sm:$0x1] %v373
      %388 = vst [vmem:[#allocation2 + $0x18] sm:$0xff] 0.0
      %389 = vst [vmem:[#allocation2 + $0x38] sm:$0x1] 0.0
      %v390 = vlaneseq
      %v391 = vand.u32 %v390, 127
      %v392 = vadd.s32 %v391, 128
      %v393 = vand.u32 %v391, 15
      %v394 = vand.u32 %v392, 15
      %v395 = vld [vmem:[#allocation2] sm:$0xff]
      %v396 = vld [vmem:[#allocation2 + $0x8] sm:$0xff]
      %v397 = vld [vmem:[#allocation2 + $0x10] sm:$0xff]
      %v398 = vld [vmem:[#allocation2 + $0x20] sm:$0x1]
      %v399 = vld [vmem:[#allocation2 + $0x28] sm:$0x1]
      %v400 = vld [vmem:[#allocation2 + $0x30] sm:$0x1]
      %402 = vset.pattern.permute.xlu0 0
      %403 = vperm.xlu0 %402, %v249
      %v404 = vpop.permute.xlu0 %403
      %407 = vset.pattern.permute.xlu0 0
      %408 = vperm.xlu0 %407, %v250
      %v409 = vpop.permute.xlu0 %408
      %v411 = vmul.f32 %v404, %v395
      %v412 = vmul.f32 %v404, %v396
      %v413 = vmul.f32 %v404, %v397
      %v414 = vmul.f32 %v409, %v398
      %v415 = vmul.f32 %v409, %v399
      %v416 = vmul.f32 %v409, %v400
      %417 = vset.pattern.permute.xlu0 7
      %418 = vperm.xlu0 %417, %v249
      %v419 = vpop.permute.xlu0 %418
      %421 = vset.pattern.permute.xlu0 7
      %422 = vperm.xlu0 %421, %v250
      %v423 = vpop.permute.xlu0 %422
      %v425 = vmul.f32 %v419, %v395
      %v426 = vmul.f32 %v419, %v396
      %v427 = vmul.f32 %v419, %v397
      %v428 = vmul.f32 %v423, %v398
      %v429 = vmul.f32 %v423, %v399
      %v430 = vmul.f32 %v423, %v400
      %437 = vrot.lane.b32.xlu0 %v425, 112
      %v438 = vpop.permute.xlu0 %437
      %439 = vrot.lane.b32.xlu0 %v426, 112
      %v440 = vpop.permute.xlu0 %439
      %441 = vrot.lane.b32.xlu0 %v427, 112
      %v442 = vpop.permute.xlu0 %441
      %443 = vrot.lane.b32.xlu0 %v428, 112
      %v444 = vpop.permute.xlu0 %443
      %445 = vrot.lane.b32.xlu0 %v429, 112
      %v446 = vpop.permute.xlu0 %445
      %447 = vrot.lane.b32.xlu0 %v430, 112
      %v448 = vpop.permute.xlu0 %447
      %vm449 = vcmask 916480
      %v450 = vsel %vm449, %v438, %v440
      %v451 = vsel %vm449, %v440, %v442
      %v452 = vsel %vm449, %v444, %v446
      %v453 = vsel %vm449, %v446, %v448
      %v460 = vadd.f32 %v411, %v450
      %v461 = vadd.f32 %v412, %v451
      %v462 = vadd.f32 %v413, %v442
      %v463 = vadd.f32 %v414, %v452
      %v464 = vadd.f32 %v415, %v453
      %v465 = vadd.f32 %v416, %v448
      %466 = vset.pattern.permute.xlu0 14
      %467 = vperm.xlu0 %466, %v249
      %v468 = vpop.permute.xlu0 %467
      %470 = vset.pattern.permute.xlu0 14
      %471 = vperm.xlu0 %470, %v250
      %v472 = vpop.permute.xlu0 %471
      %v474 = vmul.f32 %v468, %v395
      %v475 = vmul.f32 %v468, %v396
      %v476 = vmul.f32 %v468, %v397
      %v477 = vmul.f32 %v472, %v398
      %v478 = vmul.f32 %v472, %v399
      %v479 = vmul.f32 %v472, %v400
      %486 = vrot.lane.b32.xlu0 %v474, 96
      %v487 = vpop.permute.xlu0 %486
      %488 = vrot.lane.b32.xlu0 %v475, 96
      %v489 = vpop.permute.xlu0 %488
      %490 = vrot.lane.b32.xlu0 %v476, 96
      %v491 = vpop.permute.xlu0 %490
      %492 = vrot.lane.b32.xlu0 %v477, 96
      %v493 = vpop.permute.xlu0 %492
      %494 = vrot.lane.b32.xlu0 %v478, 96
      %v495 = vpop.permute.xlu0 %494
      %496 = vrot.lane.b32.xlu0 %v479, 96
      %v497 = vpop.permute.xlu0 %496
      %vm498 = vcmask 785408
      %v499 = vsel %vm498, %v487, %v489
      %v500 = vsel %vm498, %v489, %v491
      %v501 = vsel %vm498, %v493, %v495
      %v502 = vsel %vm498, %v495, %v497
      %v509 = vadd.f32 %v460, %v499
      %v510 = vadd.f32 %v461, %v500
      %v511 = vadd.f32 %v462, %v491
      %v512 = vadd.f32 %v463, %v501
      %v513 = vadd.f32 %v464, %v502
      %v514 = vadd.f32 %v465, %v497
      %515 = vset.pattern.permute.xlu0 21
      %516 = vperm.xlu0 %515, %v249
      %v517 = vpop.permute.xlu0 %516
      %519 = vset.pattern.permute.xlu0 21
      %520 = vperm.xlu0 %519, %v250
      %v521 = vpop.permute.xlu0 %520
      %v523 = vmul.f32 %v517, %v395
      %v524 = vmul.f32 %v517, %v396
      %v525 = vmul.f32 %v517, %v397
      %v526 = vmul.f32 %v521, %v398
      %v527 = vmul.f32 %v521, %v399
      %v528 = vmul.f32 %v521, %v400
      %535 = vrot.lane.b32.xlu0 %v523, 80
      %v536 = vpop.permute.xlu0 %535
      %537 = vrot.lane.b32.xlu0 %v524, 80
      %v538 = vpop.permute.xlu0 %537
      %539 = vrot.lane.b32.xlu0 %v525, 80
      %v540 = vpop.permute.xlu0 %539
      %541 = vrot.lane.b32.xlu0 %v526, 80
      %v542 = vpop.permute.xlu0 %541
      %543 = vrot.lane.b32.xlu0 %v527, 80
      %v544 = vpop.permute.xlu0 %543
      %545 = vrot.lane.b32.xlu0 %v528, 80
      %v546 = vpop.permute.xlu0 %545
      %vm547 = vcmask 654336
      %v548 = vsel %vm547, %v536, %v538
      %v549 = vsel %vm547, %v538, %v540
      %v550 = vsel %vm547, %v542, %v544
      %v551 = vsel %vm547, %v544, %v546
      %v558 = vadd.f32 %v509, %v548
      %v559 = vadd.f32 %v510, %v549
      %v560 = vadd.f32 %v511, %v540
      %v561 = vadd.f32 %v512, %v550
      %v562 = vadd.f32 %v513, %v551
      %v563 = vadd.f32 %v514, %v546
      %v564 = vld [vmem:[#allocation2 + $0x8] sm:$0xff]
      %v565 = vld [vmem:[#allocation2 + $0x10] sm:$0xff]
      %v566 = vld [vmem:[#allocation2 + $0x18] sm:$0xff]
      %v567 = vld [vmem:[#allocation2 + $0x28] sm:$0x1]
      %v568 = vld [vmem:[#allocation2 + $0x30] sm:$0x1]
      %v569 = vld [vmem:[#allocation2 + $0x38] sm:$0x1]
      %570 = vset.pattern.permute.xlu0 28
      %571 = vperm.xlu0 %570, %v249
      %v572 = vpop.permute.xlu0 %571
      %574 = vset.pattern.permute.xlu0 28
      %575 = vperm.xlu0 %574, %v250
      %v576 = vpop.permute.xlu0 %575
      %v578 = vmul.f32 %v572, %v564
      %v579 = vmul.f32 %v572, %v565
      %v580 = vmul.f32 %v572, %v566
      %v581 = vmul.f32 %v576, %v567
      %v582 = vmul.f32 %v576, %v568
      %v583 = vmul.f32 %v576, %v569
      %590 = vrot.lane.b32.xlu0 %v578, 64
      %v591 = vpop.permute.xlu0 %590
      %592 = vrot.lane.b32.xlu0 %v579, 64
      %v593 = vpop.permute.xlu0 %592
      %594 = vrot.lane.b32.xlu0 %v580, 64
      %v595 = vpop.permute.xlu0 %594
      %596 = vrot.lane.b32.xlu0 %v581, 64
      %v597 = vpop.permute.xlu0 %596
      %598 = vrot.lane.b32.xlu0 %v582, 64
      %v599 = vpop.permute.xlu0 %598
      %600 = vrot.lane.b32.xlu0 %v583, 64
      %v601 = vpop.permute.xlu0 %600
      %vm602 = vcmask 523264
      %v603 = vsel %vm602, %v591, %v593
      %v604 = vsel %vm602, %v593, %v595
      %v605 = vsel %vm602, %v597, %v599
      %v606 = vsel %vm602, %v599, %v601
      %v613 = vadd.f32 %v558, %v591
      %v614 = vadd.f32 %v559, %v603
      %v615 = vadd.f32 %v560, %v604
      %v616 = vadd.f32 %v561, %v597
      %v617 = vadd.f32 %v562, %v605
      %v618 = vadd.f32 %v563, %v606
      %619 = vset.pattern.permute.xlu0 35
      %620 = vperm.xlu0 %619, %v249
      %v621 = vpop.permute.xlu0 %620
      %623 = vset.pattern.permute.xlu0 35
      %624 = vperm.xlu0 %623, %v250
      %v625 = vpop.permute.xlu0 %624
      %v627 = vmul.f32 %v621, %v564
      %v628 = vmul.f32 %v621, %v565
      %v629 = vmul.f32 %v621, %v566
      %v630 = vmul.f32 %v625, %v567
      %v631 = vmul.f32 %v625, %v568
      %v632 = vmul.f32 %v625, %v569
      %639 = vrot.lane.b32.xlu0 %v627, 48
      %v640 = vpop.permute.xlu0 %639
      %641 = vrot.lane.b32.xlu0 %v628, 48
      %v642 = vpop.permute.xlu0 %641
      %643 = vrot.lane.b32.xlu0 %v629, 48
      %v644 = vpop.permute.xlu0 %643
      %645 = vrot.lane.b32.xlu0 %v630, 48
      %v646 = vpop.permute.xlu0 %645
      %647 = vrot.lane.b32.xlu0 %v631, 48
      %v648 = vpop.permute.xlu0 %647
      %649 = vrot.lane.b32.xlu0 %v632, 48
      %v650 = vpop.permute.xlu0 %649
      %vm651 = vcmask 392192
      %v652 = vsel %vm651, %v640, %v642
      %v653 = vsel %vm651, %v642, %v644
      %v654 = vsel %vm651, %v646, %v648
      %v655 = vsel %vm651, %v648, %v650
      %v662 = vadd.f32 %v613, %v640
      %v663 = vadd.f32 %v614, %v652
      %v664 = vadd.f32 %v615, %v653
      %v665 = vadd.f32 %v616, %v646
      %v666 = vadd.f32 %v617, %v654
      %v667 = vadd.f32 %v618, %v655
      %668 = vset.pattern.permute.xlu0 42
      %669 = vperm.xlu0 %668, %v249
      %v670 = vpop.permute.xlu0 %669
      %672 = vset.pattern.permute.xlu0 42
      %673 = vperm.xlu0 %672, %v250
      %v674 = vpop.permute.xlu0 %673
      %v676 = vmul.f32 %v670, %v564
      %v677 = vmul.f32 %v670, %v565
      %v678 = vmul.f32 %v670, %v566
      %v679 = vmul.f32 %v674, %v567
      %v680 = vmul.f32 %v674, %v568
      %v681 = vmul.f32 %v674, %v569
      %688 = vrot.lane.b32.xlu0 %v676, 32
      %v689 = vpop.permute.xlu0 %688
      %690 = vrot.lane.b32.xlu0 %v677, 32
      %v691 = vpop.permute.xlu0 %690
      %692 = vrot.lane.b32.xlu0 %v678, 32
      %v693 = vpop.permute.xlu0 %692
      %694 = vrot.lane.b32.xlu0 %v679, 32
      %v695 = vpop.permute.xlu0 %694
      %696 = vrot.lane.b32.xlu0 %v680, 32
      %v697 = vpop.permute.xlu0 %696
      %698 = vrot.lane.b32.xlu0 %v681, 32
      %v699 = vpop.permute.xlu0 %698
      %vm700 = vcmask 261120
      %v701 = vsel %vm700, %v689, %v691
      %v702 = vsel %vm700, %v691, %v693
      %v703 = vsel %vm700, %v695, %v697
      %v704 = vsel %vm700, %v697, %v699
      %v711 = vadd.f32 %v662, %v689
      %v712 = vadd.f32 %v663, %v701
      %v713 = vadd.f32 %v664, %v702
      %v714 = vadd.f32 %v665, %v695
      %v715 = vadd.f32 %v666, %v703
      %v716 = vadd.f32 %v667, %v704
      %vm717 = vcmp.ge.s32.totalorder %v393, 3
      %vm718 = vcmp.ge.s32.totalorder %v394, 3
      %vm719 = vcmp.lt.s32.totalorder %v393, 19
      %vm720 = vcmp.lt.s32.totalorder %v394, 19
      %vm721 = vmand %vm717, %vm719
      %vm722 = vmand %vm718, %vm720
      %v723 = vsel %vm721, 1, 0
      %v724 = vsel %vm722, 1, 0
      %vm725 = vcmp.eq.s32.totalorder %v723, 1
      %vm726 = vcmp.eq.s32.totalorder %v724, 1
      %733 = vrot.lane.b32.xlu0 %v711, 51
      %v734 = vpop.permute.xlu0 %733
      %735 = vrot.lane.b32.xlu0 %v712, 51
      %v736 = vpop.permute.xlu0 %735
      %737 = vrot.lane.b32.xlu0 %v713, 51
      %v738 = vpop.permute.xlu0 %737
      %739 = vrot.lane.b32.xlu0 %v714, 51
      %v740 = vpop.permute.xlu0 %739
      %741 = vrot.lane.b32.xlu0 %v715, 51
      %v742 = vpop.permute.xlu0 %741
      %743 = vrot.lane.b32.xlu0 %v716, 51
      %v744 = vpop.permute.xlu0 %743
      %vm745 = vcmask 416768
      %v746 = vsel %vm745, %v734, %v736
      %v747 = vsel %vm745, %v736, %v738
      %v748 = vsel %vm745, %v740, %v742
      %v749 = vsel %vm745, %v742, %v744
      %v754 = vsel %vm725, %v746, 0.0
      %v755 = vsel %vm726, %v747, 0.0
      %v756 = vsel %vm725, %v748, 0.0
      %v757 = vsel %vm726, %v749, 0.0
      %758 = vset.pattern.permute.xlu0 1
      %759 = vperm.xlu0 %758, %v249
      %v760 = vpop.permute.xlu0 %759
      %762 = vset.pattern.permute.xlu0 1
      %763 = vperm.xlu0 %762, %v250
      %v764 = vpop.permute.xlu0 %763
      %v766 = vmul.f32 %v760, %v395
      %v767 = vmul.f32 %v760, %v396
      %v768 = vmul.f32 %v760, %v397
      %v769 = vmul.f32 %v764, %v398
      %v770 = vmul.f32 %v764, %v399
      %v771 = vmul.f32 %v764, %v400
      %772 = vset.pattern.permute.xlu0 8
      %773 = vperm.xlu0 %772, %v249
      %v774 = vpop.permute.xlu0 %773
      %776 = vset.pattern.permute.xlu0 8
      %777 = vperm.xlu0 %776, %v250
      %v778 = vpop.permute.xlu0 %777
      %v780 = vmul.f32 %v774, %v395
      %v781 = vmul.f32 %v774, %v396
      %v782 = vmul.f32 %v774, %v397
      %v783 = vmul.f32 %v778, %v398
      %v784 = vmul.f32 %v778, %v399
      %v785 = vmul.f32 %v778, %v400
      %792 = vrot.lane.b32.xlu0 %v780, 112
      %v793 = vpop.permute.xlu0 %792
      %794 = vrot.lane.b32.xlu0 %v781, 112
      %v795 = vpop.permute.xlu0 %794
      %796 = vrot.lane.b32.xlu0 %v782, 112
      %v797 = vpop.permute.xlu0 %796
      %798 = vrot.lane.b32.xlu0 %v783, 112
      %v799 = vpop.permute.xlu0 %798
      %800 = vrot.lane.b32.xlu0 %v784, 112
      %v801 = vpop.permute.xlu0 %800
      %802 = vrot.lane.b32.xlu0 %v785, 112
      %v803 = vpop.permute.xlu0 %802
      %v804 = vsel %vm449, %v793, %v795
      %v805 = vsel %vm449, %v795, %v797
      %v806 = vsel %vm449, %v799, %v801
      %v807 = vsel %vm449, %v801, %v803
      %v814 = vadd.f32 %v766, %v804
      %v815 = vadd.f32 %v767, %v805
      %v816 = vadd.f32 %v768, %v797
      %v817 = vadd.f32 %v769, %v806
      %v818 = vadd.f32 %v770, %v807
      %v819 = vadd.f32 %v771, %v803
      %820 = vset.pattern.permute.xlu0 15
      %821 = vperm.xlu0 %820, %v249
      %v822 = vpop.permute.xlu0 %821
      %824 = vset.pattern.permute.xlu0 15
      %825 = vperm.xlu0 %824, %v250
      %v826 = vpop.permute.xlu0 %825
      %v828 = vmul.f32 %v822, %v395
      %v829 = vmul.f32 %v822, %v396
      %v830 = vmul.f32 %v822, %v397
      %v831 = vmul.f32 %v826, %v398
      %v832 = vmul.f32 %v826, %v399
      %v833 = vmul.f32 %v826, %v400
      %840 = vrot.lane.b32.xlu0 %v828, 96
      %v841 = vpop.permute.xlu0 %840
      %842 = vrot.lane.b32.xlu0 %v829, 96
      %v843 = vpop.permute.xlu0 %842
      %844 = vrot.lane.b32.xlu0 %v830, 96
      %v845 = vpop.permute.xlu0 %844
      %846 = vrot.lane.b32.xlu0 %v831, 96
      %v847 = vpop.permute.xlu0 %846
      %848 = vrot.lane.b32.xlu0 %v832, 96
      %v849 = vpop.permute.xlu0 %848
      %850 = vrot.lane.b32.xlu0 %v833, 96
      %v851 = vpop.permute.xlu0 %850
      %v852 = vsel %vm498, %v841, %v843
      %v853 = vsel %vm498, %v843, %v845
      %v854 = vsel %vm498, %v847, %v849
      %v855 = vsel %vm498, %v849, %v851
      %v862 = vadd.f32 %v814, %v852
      %v863 = vadd.f32 %v815, %v853
      %v864 = vadd.f32 %v816, %v845
      %v865 = vadd.f32 %v817, %v854
      %v866 = vadd.f32 %v818, %v855
      %v867 = vadd.f32 %v819, %v851
      %868 = vset.pattern.permute.xlu0 22
      %869 = vperm.xlu0 %868, %v249
      %v870 = vpop.permute.xlu0 %869
      %872 = vset.pattern.permute.xlu0 22
      %873 = vperm.xlu0 %872, %v250
      %v874 = vpop.permute.xlu0 %873
      %v876 = vmul.f32 %v870, %v395
      %v877 = vmul.f32 %v870, %v396
      %v878 = vmul.f32 %v870, %v397
      %v879 = vmul.f32 %v874, %v398
      %v880 = vmul.f32 %v874, %v399
      %v881 = vmul.f32 %v874, %v400
      %888 = vrot.lane.b32.xlu0 %v876, 80
      %v889 = vpop.permute.xlu0 %888
      %890 = vrot.lane.b32.xlu0 %v877, 80
      %v891 = vpop.permute.xlu0 %890
      %892 = vrot.lane.b32.xlu0 %v878, 80
      %v893 = vpop.permute.xlu0 %892
      %894 = vrot.lane.b32.xlu0 %v879, 80
      %v895 = vpop.permute.xlu0 %894
      %896 = vrot.lane.b32.xlu0 %v880, 80
      %v897 = vpop.permute.xlu0 %896
      %898 = vrot.lane.b32.xlu0 %v881, 80
      %v899 = vpop.permute.xlu0 %898
      %v900 = vsel %vm547, %v889, %v891
      %v901 = vsel %vm547, %v891, %v893
      %v902 = vsel %vm547, %v895, %v897
      %v903 = vsel %vm547, %v897, %v899
      %v910 = vadd.f32 %v862, %v900
      %v911 = vadd.f32 %v863, %v901
      %v912 = vadd.f32 %v864, %v893
      %v913 = vadd.f32 %v865, %v902
      %v914 = vadd.f32 %v866, %v903
      %v915 = vadd.f32 %v867, %v899
      %916 = vset.pattern.permute.xlu0 29
      %917 = vperm.xlu0 %916, %v249
      %v918 = vpop.permute.xlu0 %917
      %920 = vset.pattern.permute.xlu0 29
      %921 = vperm.xlu0 %920, %v250
      %v922 = vpop.permute.xlu0 %921
      %v924 = vmul.f32 %v918, %v564
      %v925 = vmul.f32 %v918, %v565
      %v926 = vmul.f32 %v918, %v566
      %v927 = vmul.f32 %v922, %v567
      %v928 = vmul.f32 %v922, %v568
      %v929 = vmul.f32 %v922, %v569
      %936 = vrot.lane.b32.xlu0 %v924, 64
      %v937 = vpop.permute.xlu0 %936
      %938 = vrot.lane.b32.xlu0 %v925, 64
      %v939 = vpop.permute.xlu0 %938
      %940 = vrot.lane.b32.xlu0 %v926, 64
      %v941 = vpop.permute.xlu0 %940
      %942 = vrot.lane.b32.xlu0 %v927, 64
      %v943 = vpop.permute.xlu0 %942
      %944 = vrot.lane.b32.xlu0 %v928, 64
      %v945 = vpop.permute.xlu0 %944
      %946 = vrot.lane.b32.xlu0 %v929, 64
      %v947 = vpop.permute.xlu0 %946
      %v948 = vsel %vm602, %v937, %v939
      %v949 = vsel %vm602, %v939, %v941
      %v950 = vsel %vm602, %v943, %v945
      %v951 = vsel %vm602, %v945, %v947
      %v958 = vadd.f32 %v910, %v937
      %v959 = vadd.f32 %v911, %v948
      %v960 = vadd.f32 %v912, %v949
      %v961 = vadd.f32 %v913, %v943
      %v962 = vadd.f32 %v914, %v950
      %v963 = vadd.f32 %v915, %v951
      %964 = vset.pattern.permute.xlu0 36
      %965 = vperm.xlu0 %964, %v249
      %v966 = vpop.permute.xlu0 %965
      %968 = vset.pattern.permute.xlu0 36
      %969 = vperm.xlu0 %968, %v250
      %v970 = vpop.permute.xlu0 %969
      %v972 = vmul.f32 %v966, %v564
      %v973 = vmul.f32 %v966, %v565
      %v974 = vmul.f32 %v966, %v566
      %v975 = vmul.f32 %v970, %v567
      %v976 = vmul.f32 %v970, %v568
      %v977 = vmul.f32 %v970, %v569
      %984 = vrot.lane.b32.xlu0 %v972, 48
      %v985 = vpop.permute.xlu0 %984
      %986 = vrot.lane.b32.xlu0 %v973, 48
      %v987 = vpop.permute.xlu0 %986
      %988 = vrot.lane.b32.xlu0 %v974, 48
      %v989 = vpop.permute.xlu0 %988
      %990 = vrot.lane.b32.xlu0 %v975, 48
      %v991 = vpop.permute.xlu0 %990
      %992 = vrot.lane.b32.xlu0 %v976, 48
      %v993 = vpop.permute.xlu0 %992
      %994 = vrot.lane.b32.xlu0 %v977, 48
      %v995 = vpop.permute.xlu0 %994
      %v996 = vsel %vm651, %v985, %v987
      %v997 = vsel %vm651, %v987, %v989
      %v998 = vsel %vm651, %v991, %v993
      %v999 = vsel %vm651, %v993, %v995
      %v1006 = vadd.f32 %v958, %v985
      %v1007 = vadd.f32 %v959, %v996
      %v1008 = vadd.f32 %v960, %v997
      %v1009 = vadd.f32 %v961, %v991
      %v1010 = vadd.f32 %v962, %v998
      %v1011 = vadd.f32 %v963, %v999
      %1012 = vset.pattern.permute.xlu0 43
      %1013 = vperm.xlu0 %1012, %v249
      %v1014 = vpop.permute.xlu0 %1013
      %1016 = vset.pattern.permute.xlu0 43
      %1017 = vperm.xlu0 %1016, %v250
      %v1018 = vpop.permute.xlu0 %1017
      %v1020 = vmul.f32 %v1014, %v564
      %v1021 = vmul.f32 %v1014, %v565
      %v1022 = vmul.f32 %v1014, %v566
      %v1023 = vmul.f32 %v1018, %v567
      %v1024 = vmul.f32 %v1018, %v568
      %v1025 = vmul.f32 %v1018, %v569
      %1032 = vrot.lane.b32.xlu0 %v1020, 32
      %v1033 = vpop.permute.xlu0 %1032
      %1034 = vrot.lane.b32.xlu0 %v1021, 32
      %v1035 = vpop.permute.xlu0 %1034
      %1036 = vrot.lane.b32.xlu0 %v1022, 32
      %v1037 = vpop.permute.xlu0 %1036
      %1038 = vrot.lane.b32.xlu0 %v1023, 32
      %v1039 = vpop.permute.xlu0 %1038
      %1040 = vrot.lane.b32.xlu0 %v1024, 32
      %v1041 = vpop.permute.xlu0 %1040
      %1042 = vrot.lane.b32.xlu0 %v1025, 32
      %v1043 = vpop.permute.xlu0 %1042
      %v1044 = vsel %vm700, %v1033, %v1035
      %v1045 = vsel %vm700, %v1035, %v1037
      %v1046 = vsel %vm700, %v1039, %v1041
      %v1047 = vsel %vm700, %v1041, %v1043
      %v1054 = vadd.f32 %v1006, %v1033
      %v1055 = vadd.f32 %v1007, %v1044
      %v1056 = vadd.f32 %v1008, %v1045
      %v1057 = vadd.f32 %v1009, %v1039
      %v1058 = vadd.f32 %v1010, %v1046
      %v1059 = vadd.f32 %v1011, %v1047
      %vm1060 = vcmp.ge.s32.totalorder %v393, 2
      %vm1061 = vcmp.ge.s32.totalorder %v394, 2
      %vm1062 = vcmp.lt.s32.totalorder %v393, 18
      %vm1063 = vcmp.lt.s32.totalorder %v394, 18
      %vm1064 = vmand %vm1060, %vm1062
      %vm1065 = vmand %vm1061, %vm1063
      %v1066 = vsel %vm1064, 1, 0
      %v1067 = vsel %vm1065, 1, 0
      %vm1068 = vcmp.eq.s32.totalorder %v1066, 1
      %vm1069 = vcmp.eq.s32.totalorder %v1067, 1
      %1076 = vrot.lane.b32.xlu0 %v1054, 50
      %v1077 = vpop.permute.xlu0 %1076
      %1078 = vrot.lane.b32.xlu0 %v1055, 50
      %v1079 = vpop.permute.xlu0 %1078
      %1080 = vrot.lane.b32.xlu0 %v1056, 50
      %v1081 = vpop.permute.xlu0 %1080
      %1082 = vrot.lane.b32.xlu0 %v1057, 50
      %v1083 = vpop.permute.xlu0 %1082
      %1084 = vrot.lane.b32.xlu0 %v1058, 50
      %v1085 = vpop.permute.xlu0 %1084
      %1086 = vrot.lane.b32.xlu0 %v1059, 50
      %v1087 = vpop.permute.xlu0 %1086
      %vm1088 = vcmask 408576
      %v1089 = vsel %vm1088, %v1077, %v1079
      %v1090 = vsel %vm1088, %v1079, %v1081
      %v1091 = vsel %vm1088, %v1083, %v1085
      %v1092 = vsel %vm1088, %v1085, %v1087
      %v1097 = vsel %vm1068, %v1089, 0.0
      %v1098 = vsel %vm1069, %v1090, 0.0
      %v1099 = vsel %vm1068, %v1091, 0.0
      %v1100 = vsel %vm1069, %v1092, 0.0
      %v1101 = vadd.f32 %v754, %v1097
      %v1102 = vadd.f32 %v755, %v1098
      %v1103 = vadd.f32 %v756, %v1099
      %v1104 = vadd.f32 %v757, %v1100
      %1105 = vset.pattern.permute.xlu0 2
      %1106 = vperm.xlu0 %1105, %v249
      %v1107 = vpop.permute.xlu0 %1106
      %1109 = vset.pattern.permute.xlu0 2
      %1110 = vperm.xlu0 %1109, %v250
      %v1111 = vpop.permute.xlu0 %1110
      %v1113 = vmul.f32 %v1107, %v395
      %v1114 = vmul.f32 %v1107, %v396
      %v1115 = vmul.f32 %v1107, %v397
      %v1116 = vmul.f32 %v1111, %v398
      %v1117 = vmul.f32 %v1111, %v399
      %v1118 = vmul.f32 %v1111, %v400
      %1119 = vset.pattern.permute.xlu0 9
      %1120 = vperm.xlu0 %1119, %v249
      %v1121 = vpop.permute.xlu0 %1120
      %1123 = vset.pattern.permute.xlu0 9
      %1124 = vperm.xlu0 %1123, %v250
      %v1125 = vpop.permute.xlu0 %1124
      %v1127 = vmul.f32 %v1121, %v395
      %v1128 = vmul.f32 %v1121, %v396
      %v1129 = vmul.f32 %v1121, %v397
      %v1130 = vmul.f32 %v1125, %v398
      %v1131 = vmul.f32 %v1125, %v399
      %v1132 = vmul.f32 %v1125, %v400
      %1139 = vrot.lane.b32.xlu0 %v1127, 112
      %v1140 = vpop.permute.xlu0 %1139
      %1141 = vrot.lane.b32.xlu0 %v1128, 112
      %v1142 = vpop.permute.xlu0 %1141
      %1143 = vrot.lane.b32.xlu0 %v1129, 112
      %v1144 = vpop.permute.xlu0 %1143
      %1145 = vrot.lane.b32.xlu0 %v1130, 112
      %v1146 = vpop.permute.xlu0 %1145
      %1147 = vrot.lane.b32.xlu0 %v1131, 112
      %v1148 = vpop.permute.xlu0 %1147
      %1149 = vrot.lane.b32.xlu0 %v1132, 112
      %v1150 = vpop.permute.xlu0 %1149
      %v1151 = vsel %vm449, %v1140, %v1142
      %v1152 = vsel %vm449, %v1142, %v1144
      %v1153 = vsel %vm449, %v1146, %v1148
      %v1154 = vsel %vm449, %v1148, %v1150
      %v1161 = vadd.f32 %v1113, %v1151
      %v1162 = vadd.f32 %v1114, %v1152
      %v1163 = vadd.f32 %v1115, %v1144
      %v1164 = vadd.f32 %v1116, %v1153
      %v1165 = vadd.f32 %v1117, %v1154
      %v1166 = vadd.f32 %v1118, %v1150
      %1167 = vset.pattern.permute.xlu0 16
      %1168 = vperm.xlu0 %1167, %v249
      %v1169 = vpop.permute.xlu0 %1168
      %1171 = vset.pattern.permute.xlu0 16
      %1172 = vperm.xlu0 %1171, %v250
      %v1173 = vpop.permute.xlu0 %1172
      %v1175 = vmul.f32 %v1169, %v395
      %v1176 = vmul.f32 %v1169, %v396
      %v1177 = vmul.f32 %v1169, %v397
      %v1178 = vmul.f32 %v1173, %v398
      %v1179 = vmul.f32 %v1173, %v399
      %v1180 = vmul.f32 %v1173, %v400
      %1187 = vrot.lane.b32.xlu0 %v1175, 96
      %v1188 = vpop.permute.xlu0 %1187
      %1189 = vrot.lane.b32.xlu0 %v1176, 96
      %v1190 = vpop.permute.xlu0 %1189
      %1191 = vrot.lane.b32.xlu0 %v1177, 96
      %v1192 = vpop.permute.xlu0 %1191
      %1193 = vrot.lane.b32.xlu0 %v1178, 96
      %v1194 = vpop.permute.xlu0 %1193
      %1195 = vrot.lane.b32.xlu0 %v1179, 96
      %v1196 = vpop.permute.xlu0 %1195
      %1197 = vrot.lane.b32.xlu0 %v1180, 96
      %v1198 = vpop.permute.xlu0 %1197
      %v1199 = vsel %vm498, %v1188, %v1190
      %v1200 = vsel %vm498, %v1190, %v1192
      %v1201 = vsel %vm498, %v1194, %v1196
      %v1202 = vsel %vm498, %v1196, %v1198
      %v1209 = vadd.f32 %v1161, %v1199
      %v1210 = vadd.f32 %v1162, %v1200
      %v1211 = vadd.f32 %v1163, %v1192
      %v1212 = vadd.f32 %v1164, %v1201
      %v1213 = vadd.f32 %v1165, %v1202
      %v1214 = vadd.f32 %v1166, %v1198
      %1215 = vset.pattern.permute.xlu0 23
      %1216 = vperm.xlu0 %1215, %v249
      %v1217 = vpop.permute.xlu0 %1216
      %1219 = vset.pattern.permute.xlu0 23
      %1220 = vperm.xlu0 %1219, %v250
      %v1221 = vpop.permute.xlu0 %1220
      %v1223 = vmul.f32 %v1217, %v395
      %v1224 = vmul.f32 %v1217, %v396
      %v1225 = vmul.f32 %v1217, %v397
      %v1226 = vmul.f32 %v1221, %v398
      %v1227 = vmul.f32 %v1221, %v399
      %v1228 = vmul.f32 %v1221, %v400
      %1235 = vrot.lane.b32.xlu0 %v1223, 80
      %v1236 = vpop.permute.xlu0 %1235
      %1237 = vrot.lane.b32.xlu0 %v1224, 80
      %v1238 = vpop.permute.xlu0 %1237
      %1239 = vrot.lane.b32.xlu0 %v1225, 80
      %v1240 = vpop.permute.xlu0 %1239
      %1241 = vrot.lane.b32.xlu0 %v1226, 80
      %v1242 = vpop.permute.xlu0 %1241
      %1243 = vrot.lane.b32.xlu0 %v1227, 80
      %v1244 = vpop.permute.xlu0 %1243
      %1245 = vrot.lane.b32.xlu0 %v1228, 80
      %v1246 = vpop.permute.xlu0 %1245
      %v1247 = vsel %vm547, %v1236, %v1238
      %v1248 = vsel %vm547, %v1238, %v1240
      %v1249 = vsel %vm547, %v1242, %v1244
      %v1250 = vsel %vm547, %v1244, %v1246
      %v1257 = vadd.f32 %v1209, %v1247
      %v1258 = vadd.f32 %v1210, %v1248
      %v1259 = vadd.f32 %v1211, %v1240
      %v1260 = vadd.f32 %v1212, %v1249
      %v1261 = vadd.f32 %v1213, %v1250
      %v1262 = vadd.f32 %v1214, %v1246
      %1263 = vset.pattern.permute.xlu0 30
      %1264 = vperm.xlu0 %1263, %v249
      %v1265 = vpop.permute.xlu0 %1264
      %1267 = vset.pattern.permute.xlu0 30
      %1268 = vperm.xlu0 %1267, %v250
      %v1269 = vpop.permute.xlu0 %1268
      %v1271 = vmul.f32 %v1265, %v564
      %v1272 = vmul.f32 %v1265, %v565
      %v1273 = vmul.f32 %v1265, %v566
      %v1274 = vmul.f32 %v1269, %v567
      %v1275 = vmul.f32 %v1269, %v568
      %v1276 = vmul.f32 %v1269, %v569
      %1283 = vrot.lane.b32.xlu0 %v1271, 64
      %v1284 = vpop.permute.xlu0 %1283
      %1285 = vrot.lane.b32.xlu0 %v1272, 64
      %v1286 = vpop.permute.xlu0 %1285
      %1287 = vrot.lane.b32.xlu0 %v1273, 64
      %v1288 = vpop.permute.xlu0 %1287
      %1289 = vrot.lane.b32.xlu0 %v1274, 64
      %v1290 = vpop.permute.xlu0 %1289
      %1291 = vrot.lane.b32.xlu0 %v1275, 64
      %v1292 = vpop.permute.xlu0 %1291
      %1293 = vrot.lane.b32.xlu0 %v1276, 64
      %v1294 = vpop.permute.xlu0 %1293
      %v1295 = vsel %vm602, %v1284, %v1286
      %v1296 = vsel %vm602, %v1286, %v1288
      %v1297 = vsel %vm602, %v1290, %v1292
      %v1298 = vsel %vm602, %v1292, %v1294
      %v1305 = vadd.f32 %v1257, %v1284
      %v1306 = vadd.f32 %v1258, %v1295
      %v1307 = vadd.f32 %v1259, %v1296
      %v1308 = vadd.f32 %v1260, %v1290
      %v1309 = vadd.f32 %v1261, %v1297
      %v1310 = vadd.f32 %v1262, %v1298
      %1311 = vset.pattern.permute.xlu0 37
      %1312 = vperm.xlu0 %1311, %v249
      %v1313 = vpop.permute.xlu0 %1312
      %1315 = vset.pattern.permute.xlu0 37
      %1316 = vperm.xlu0 %1315, %v250
      %v1317 = vpop.permute.xlu0 %1316
      %v1319 = vmul.f32 %v1313, %v564
      %v1320 = vmul.f32 %v1313, %v565
      %v1321 = vmul.f32 %v1313, %v566
      %v1322 = vmul.f32 %v1317, %v567
      %v1323 = vmul.f32 %v1317, %v568
      %v1324 = vmul.f32 %v1317, %v569
      %1331 = vrot.lane.b32.xlu0 %v1319, 48
      %v1332 = vpop.permute.xlu0 %1331
      %1333 = vrot.lane.b32.xlu0 %v1320, 48
      %v1334 = vpop.permute.xlu0 %1333
      %1335 = vrot.lane.b32.xlu0 %v1321, 48
      %v1336 = vpop.permute.xlu0 %1335
      %1337 = vrot.lane.b32.xlu0 %v1322, 48
      %v1338 = vpop.permute.xlu0 %1337
      %1339 = vrot.lane.b32.xlu0 %v1323, 48
      %v1340 = vpop.permute.xlu0 %1339
      %1341 = vrot.lane.b32.xlu0 %v1324, 48
      %v1342 = vpop.permute.xlu0 %1341
      %v1343 = vsel %vm651, %v1332, %v1334
      %v1344 = vsel %vm651, %v1334, %v1336
      %v1345 = vsel %vm651, %v1338, %v1340
      %v1346 = vsel %vm651, %v1340, %v1342
      %v1353 = vadd.f32 %v1305, %v1332
      %v1354 = vadd.f32 %v1306, %v1343
      %v1355 = vadd.f32 %v1307, %v1344
      %v1356 = vadd.f32 %v1308, %v1338
      %v1357 = vadd.f32 %v1309, %v1345
      %v1358 = vadd.f32 %v1310, %v1346
      %1359 = vset.pattern.permute.xlu0 44
      %1360 = vperm.xlu0 %1359, %v249
      %v1361 = vpop.permute.xlu0 %1360
      %1363 = vset.pattern.permute.xlu0 44
      %1364 = vperm.xlu0 %1363, %v250
      %v1365 = vpop.permute.xlu0 %1364
      %v1367 = vmul.f32 %v1361, %v564
      %v1368 = vmul.f32 %v1361, %v565
      %v1369 = vmul.f32 %v1361, %v566
      %v1370 = vmul.f32 %v1365, %v567
      %v1371 = vmul.f32 %v1365, %v568
      %v1372 = vmul.f32 %v1365, %v569
      %1379 = vrot.lane.b32.xlu0 %v1367, 32
      %v1380 = vpop.permute.xlu0 %1379
      %1381 = vrot.lane.b32.xlu0 %v1368, 32
      %v1382 = vpop.permute.xlu0 %1381
      %1383 = vrot.lane.b32.xlu0 %v1369, 32
      %v1384 = vpop.permute.xlu0 %1383
      %1385 = vrot.lane.b32.xlu0 %v1370, 32
      %v1386 = vpop.permute.xlu0 %1385
      %1387 = vrot.lane.b32.xlu0 %v1371, 32
      %v1388 = vpop.permute.xlu0 %1387
      %1389 = vrot.lane.b32.xlu0 %v1372, 32
      %v1390 = vpop.permute.xlu0 %1389
      %v1391 = vsel %vm700, %v1380, %v1382
      %v1392 = vsel %vm700, %v1382, %v1384
      %v1393 = vsel %vm700, %v1386, %v1388
      %v1394 = vsel %vm700, %v1388, %v1390
      %v1401 = vadd.f32 %v1353, %v1380
      %v1402 = vadd.f32 %v1354, %v1391
      %v1403 = vadd.f32 %v1355, %v1392
      %v1404 = vadd.f32 %v1356, %v1386
      %v1405 = vadd.f32 %v1357, %v1393
      %v1406 = vadd.f32 %v1358, %v1394
      %vm1407 = vcmp.ge.s32.totalorder %v393, 1
      %vm1408 = vcmp.ge.s32.totalorder %v394, 1
      %vm1409 = vcmp.lt.s32.totalorder %v393, 17
      %vm1410 = vcmp.lt.s32.totalorder %v394, 17
      %vm1411 = vmand %vm1407, %vm1409
      %vm1412 = vmand %vm1408, %vm1410
      %v1413 = vsel %vm1411, 1, 0
      %v1414 = vsel %vm1412, 1, 0
      %vm1415 = vcmp.eq.s32.totalorder %v1413, 1
      %vm1416 = vcmp.eq.s32.totalorder %v1414, 1
      %1423 = vrot.lane.b32.xlu0 %v1401, 49
      %v1424 = vpop.permute.xlu0 %1423
      %1425 = vrot.lane.b32.xlu0 %v1402, 49
      %v1426 = vpop.permute.xlu0 %1425
      %1427 = vrot.lane.b32.xlu0 %v1403, 49
      %v1428 = vpop.permute.xlu0 %1427
      %1429 = vrot.lane.b32.xlu0 %v1404, 49
      %v1430 = vpop.permute.xlu0 %1429
      %1431 = vrot.lane.b32.xlu0 %v1405, 49
      %v1432 = vpop.permute.xlu0 %1431
      %1433 = vrot.lane.b32.xlu0 %v1406, 49
      %v1434 = vpop.permute.xlu0 %1433
      %vm1435 = vcmask 400384
      %v1436 = vsel %vm1435, %v1424, %v1426
      %v1437 = vsel %vm1435, %v1426, %v1428
      %v1438 = vsel %vm1435, %v1430, %v1432
      %v1439 = vsel %vm1435, %v1432, %v1434
      %v1444 = vsel %vm1415, %v1436, 0.0
      %v1445 = vsel %vm1416, %v1437, 0.0
      %v1446 = vsel %vm1415, %v1438, 0.0
      %v1447 = vsel %vm1416, %v1439, 0.0
      %v1448 = vadd.f32 %v1101, %v1444
      %v1449 = vadd.f32 %v1102, %v1445
      %v1450 = vadd.f32 %v1103, %v1446
      %v1451 = vadd.f32 %v1104, %v1447
      %1452 = vset.pattern.permute.xlu0 3
      %1453 = vperm.xlu0 %1452, %v249
      %v1454 = vpop.permute.xlu0 %1453
      %1456 = vset.pattern.permute.xlu0 3
      %1457 = vperm.xlu0 %1456, %v250
      %v1458 = vpop.permute.xlu0 %1457
      %v1460 = vmul.f32 %v1454, %v395
      %v1461 = vmul.f32 %v1454, %v396
      %v1462 = vmul.f32 %v1454, %v397
      %v1463 = vmul.f32 %v1458, %v398
      %v1464 = vmul.f32 %v1458, %v399
      %v1465 = vmul.f32 %v1458, %v400
      %1466 = vset.pattern.permute.xlu0 10
      %1467 = vperm.xlu0 %1466, %v249
      %v1468 = vpop.permute.xlu0 %1467
      %1470 = vset.pattern.permute.xlu0 10
      %1471 = vperm.xlu0 %1470, %v250
      %v1472 = vpop.permute.xlu0 %1471
      %v1474 = vmul.f32 %v1468, %v395
      %v1475 = vmul.f32 %v1468, %v396
      %v1476 = vmul.f32 %v1468, %v397
      %v1477 = vmul.f32 %v1472, %v398
      %v1478 = vmul.f32 %v1472, %v399
      %v1479 = vmul.f32 %v1472, %v400
      %1486 = vrot.lane.b32.xlu0 %v1474, 112
      %v1487 = vpop.permute.xlu0 %1486
      %1488 = vrot.lane.b32.xlu0 %v1475, 112
      %v1489 = vpop.permute.xlu0 %1488
      %1490 = vrot.lane.b32.xlu0 %v1476, 112
      %v1491 = vpop.permute.xlu0 %1490
      %1492 = vrot.lane.b32.xlu0 %v1477, 112
      %v1493 = vpop.permute.xlu0 %1492
      %1494 = vrot.lane.b32.xlu0 %v1478, 112
      %v1495 = vpop.permute.xlu0 %1494
      %1496 = vrot.lane.b32.xlu0 %v1479, 112
      %v1497 = vpop.permute.xlu0 %1496
      %v1498 = vsel %vm449, %v1487, %v1489
      %v1499 = vsel %vm449, %v1489, %v1491
      %v1500 = vsel %vm449, %v1493, %v1495
      %v1501 = vsel %vm449, %v1495, %v1497
      %v1508 = vadd.f32 %v1460, %v1498
      %v1509 = vadd.f32 %v1461, %v1499
      %v1510 = vadd.f32 %v1462, %v1491
      %v1511 = vadd.f32 %v1463, %v1500
      %v1512 = vadd.f32 %v1464, %v1501
      %v1513 = vadd.f32 %v1465, %v1497
      %1514 = vset.pattern.permute.xlu0 17
      %1515 = vperm.xlu0 %1514, %v249
      %v1516 = vpop.permute.xlu0 %1515
      %1518 = vset.pattern.permute.xlu0 17
      %1519 = vperm.xlu0 %1518, %v250
      %v1520 = vpop.permute.xlu0 %1519
      %v1522 = vmul.f32 %v1516, %v395
      %v1523 = vmul.f32 %v1516, %v396
      %v1524 = vmul.f32 %v1516, %v397
      %v1525 = vmul.f32 %v1520, %v398
      %v1526 = vmul.f32 %v1520, %v399
      %v1527 = vmul.f32 %v1520, %v400
      %1534 = vrot.lane.b32.xlu0 %v1522, 96
      %v1535 = vpop.permute.xlu0 %1534
      %1536 = vrot.lane.b32.xlu0 %v1523, 96
      %v1537 = vpop.permute.xlu0 %1536
      %1538 = vrot.lane.b32.xlu0 %v1524, 96
      %v1539 = vpop.permute.xlu0 %1538
      %1540 = vrot.lane.b32.xlu0 %v1525, 96
      %v1541 = vpop.permute.xlu0 %1540
      %1542 = vrot.lane.b32.xlu0 %v1526, 96
      %v1543 = vpop.permute.xlu0 %1542
      %1544 = vrot.lane.b32.xlu0 %v1527, 96
      %v1545 = vpop.permute.xlu0 %1544
      %v1546 = vsel %vm498, %v1535, %v1537
      %v1547 = vsel %vm498, %v1537, %v1539
      %v1548 = vsel %vm498, %v1541, %v1543
      %v1549 = vsel %vm498, %v1543, %v1545
      %v1556 = vadd.f32 %v1508, %v1546
      %v1557 = vadd.f32 %v1509, %v1547
      %v1558 = vadd.f32 %v1510, %v1539
      %v1559 = vadd.f32 %v1511, %v1548
      %v1560 = vadd.f32 %v1512, %v1549
      %v1561 = vadd.f32 %v1513, %v1545
      %1562 = vset.pattern.permute.xlu0 24
      %1563 = vperm.xlu0 %1562, %v249
      %v1564 = vpop.permute.xlu0 %1563
      %1566 = vset.pattern.permute.xlu0 24
      %1567 = vperm.xlu0 %1566, %v250
      %v1568 = vpop.permute.xlu0 %1567
      %v1570 = vmul.f32 %v1564, %v396
      %v1571 = vmul.f32 %v1564, %v397
      %v1572 = vmul.f32 %v1568, %v399
      %v1573 = vmul.f32 %v1568, %v400
      %1578 = vrot.lane.b32.xlu0 %v1570, 80
      %v1579 = vpop.permute.xlu0 %1578
      %1580 = vrot.lane.b32.xlu0 %v1571, 80
      %v1581 = vpop.permute.xlu0 %1580
      %1582 = vrot.lane.b32.xlu0 %v1572, 80
      %v1583 = vpop.permute.xlu0 %1582
      %1584 = vrot.lane.b32.xlu0 %v1573, 80
      %v1585 = vpop.permute.xlu0 %1584
      %v1586 = vsel %vm547, %v1579, %v1581
      %v1587 = vsel %vm547, %v1583, %v1585
      %v1594 = vadd.f32 %v1556, %v1579
      %v1595 = vadd.f32 %v1557, %v1586
      %v1596 = vadd.f32 %v1558, %v1581
      %v1597 = vadd.f32 %v1559, %v1583
      %v1598 = vadd.f32 %v1560, %v1587
      %v1599 = vadd.f32 %v1561, %v1585
      %1600 = vset.pattern.permute.xlu0 31
      %1601 = vperm.xlu0 %1600, %v249
      %v1602 = vpop.permute.xlu0 %1601
      %1604 = vset.pattern.permute.xlu0 31
      %1605 = vperm.xlu0 %1604, %v250
      %v1606 = vpop.permute.xlu0 %1605
      %v1608 = vmul.f32 %v1602, %v564
      %v1609 = vmul.f32 %v1602, %v565
      %v1610 = vmul.f32 %v1602, %v566
      %v1611 = vmul.f32 %v1606, %v567
      %v1612 = vmul.f32 %v1606, %v568
      %v1613 = vmul.f32 %v1606, %v569
      %1620 = vrot.lane.b32.xlu0 %v1608, 64
      %v1621 = vpop.permute.xlu0 %1620
      %1622 = vrot.lane.b32.xlu0 %v1609, 64
      %v1623 = vpop.permute.xlu0 %1622
      %1624 = vrot.lane.b32.xlu0 %v1610, 64
      %v1625 = vpop.permute.xlu0 %1624
      %1626 = vrot.lane.b32.xlu0 %v1611, 64
      %v1627 = vpop.permute.xlu0 %1626
      %1628 = vrot.lane.b32.xlu0 %v1612, 64
      %v1629 = vpop.permute.xlu0 %1628
      %1630 = vrot.lane.b32.xlu0 %v1613, 64
      %v1631 = vpop.permute.xlu0 %1630
      %v1632 = vsel %vm602, %v1621, %v1623
      %v1633 = vsel %vm602, %v1623, %v1625
      %v1634 = vsel %vm602, %v1627, %v1629
      %v1635 = vsel %vm602, %v1629, %v1631
      %v1642 = vadd.f32 %v1594, %v1621
      %v1643 = vadd.f32 %v1595, %v1632
      %v1644 = vadd.f32 %v1596, %v1633
      %v1645 = vadd.f32 %v1597, %v1627
      %v1646 = vadd.f32 %v1598, %v1634
      %v1647 = vadd.f32 %v1599, %v1635
      %1648 = vset.pattern.permute.xlu0 38
      %1649 = vperm.xlu0 %1648, %v249
      %v1650 = vpop.permute.xlu0 %1649
      %1652 = vset.pattern.permute.xlu0 38
      %1653 = vperm.xlu0 %1652, %v250
      %v1654 = vpop.permute.xlu0 %1653
      %v1656 = vmul.f32 %v1650, %v564
      %v1657 = vmul.f32 %v1650, %v565
      %v1658 = vmul.f32 %v1650, %v566
      %v1659 = vmul.f32 %v1654, %v567
      %v1660 = vmul.f32 %v1654, %v568
      %v1661 = vmul.f32 %v1654, %v569
      %1668 = vrot.lane.b32.xlu0 %v1656, 48
      %v1669 = vpop.permute.xlu0 %1668
      %1670 = vrot.lane.b32.xlu0 %v1657, 48
      %v1671 = vpop.permute.xlu0 %1670
      %1672 = vrot.lane.b32.xlu0 %v1658, 48
      %v1673 = vpop.permute.xlu0 %1672
      %1674 = vrot.lane.b32.xlu0 %v1659, 48
      %v1675 = vpop.permute.xlu0 %1674
      %1676 = vrot.lane.b32.xlu0 %v1660, 48
      %v1677 = vpop.permute.xlu0 %1676
      %1678 = vrot.lane.b32.xlu0 %v1661, 48
      %v1679 = vpop.permute.xlu0 %1678
      %v1680 = vsel %vm651, %v1669, %v1671
      %v1681 = vsel %vm651, %v1671, %v1673
      %v1682 = vsel %vm651, %v1675, %v1677
      %v1683 = vsel %vm651, %v1677, %v1679
      %v1690 = vadd.f32 %v1642, %v1669
      %v1691 = vadd.f32 %v1643, %v1680
      %v1692 = vadd.f32 %v1644, %v1681
      %v1693 = vadd.f32 %v1645, %v1675
      %v1694 = vadd.f32 %v1646, %v1682
      %v1695 = vadd.f32 %v1647, %v1683
      %1696 = vset.pattern.permute.xlu0 45
      %1697 = vperm.xlu0 %1696, %v249
      %v1698 = vpop.permute.xlu0 %1697
      %1700 = vset.pattern.permute.xlu0 45
      %1701 = vperm.xlu0 %1700, %v250
      %v1702 = vpop.permute.xlu0 %1701
      %v1704 = vmul.f32 %v1698, %v564
      %v1705 = vmul.f32 %v1698, %v565
      %v1706 = vmul.f32 %v1698, %v566
      %v1707 = vmul.f32 %v1702, %v567
      %v1708 = vmul.f32 %v1702, %v568
      %v1709 = vmul.f32 %v1702, %v569
      %1716 = vrot.lane.b32.xlu0 %v1704, 32
      %v1717 = vpop.permute.xlu0 %1716
      %1718 = vrot.lane.b32.xlu0 %v1705, 32
      %v1719 = vpop.permute.xlu0 %1718
      %1720 = vrot.lane.b32.xlu0 %v1706, 32
      %v1721 = vpop.permute.xlu0 %1720
      %1722 = vrot.lane.b32.xlu0 %v1707, 32
      %v1723 = vpop.permute.xlu0 %1722
      %1724 = vrot.lane.b32.xlu0 %v1708, 32
      %v1725 = vpop.permute.xlu0 %1724
      %1726 = vrot.lane.b32.xlu0 %v1709, 32
      %v1727 = vpop.permute.xlu0 %1726
      %v1728 = vsel %vm700, %v1717, %v1719
      %v1729 = vsel %vm700, %v1719, %v1721
      %v1730 = vsel %vm700, %v1723, %v1725
      %v1731 = vsel %vm700, %v1725, %v1727
      %v1738 = vadd.f32 %v1690, %v1717
      %v1739 = vadd.f32 %v1691, %v1728
      %v1740 = vadd.f32 %v1692, %v1729
      %v1741 = vadd.f32 %v1693, %v1723
      %v1742 = vadd.f32 %v1694, %v1730
      %v1743 = vadd.f32 %v1695, %v1731
      %1750 = vrot.lane.b32.xlu0 %v1738, 48
      %v1751 = vpop.permute.xlu0 %1750
      %1752 = vrot.lane.b32.xlu0 %v1739, 48
      %v1753 = vpop.permute.xlu0 %1752
      %1754 = vrot.lane.b32.xlu0 %v1740, 48
      %v1755 = vpop.permute.xlu0 %1754
      %1756 = vrot.lane.b32.xlu0 %v1741, 48
      %v1757 = vpop.permute.xlu0 %1756
      %1758 = vrot.lane.b32.xlu0 %v1742, 48
      %v1759 = vpop.permute.xlu0 %1758
      %1760 = vrot.lane.b32.xlu0 %v1743, 48
      %v1761 = vpop.permute.xlu0 %1760
      %v1762 = vsel %vm651, %v1751, %v1753
      %v1763 = vsel %vm651, %v1753, %v1755
      %v1764 = vsel %vm651, %v1757, %v1759
      %v1765 = vsel %vm651, %v1759, %v1761
      %v1770 = vadd.f32 %v1448, %v1762
      %v1771 = vadd.f32 %v1449, %v1763
      %v1772 = vadd.f32 %v1450, %v1764
      %v1773 = vadd.f32 %v1451, %v1765
      %1774 = vset.pattern.permute.xlu0 4
      %1775 = vperm.xlu0 %1774, %v249
      %v1776 = vpop.permute.xlu0 %1775
      %1778 = vset.pattern.permute.xlu0 4
      %1779 = vperm.xlu0 %1778, %v250
      %v1780 = vpop.permute.xlu0 %1779
      %v1782 = vmul.f32 %v1776, %v395
      %v1783 = vmul.f32 %v1776, %v396
      %v1784 = vmul.f32 %v1776, %v397
      %v1785 = vmul.f32 %v1780, %v398
      %v1786 = vmul.f32 %v1780, %v399
      %v1787 = vmul.f32 %v1780, %v400
      %1788 = vset.pattern.permute.xlu0 11
      %1789 = vperm.xlu0 %1788, %v249
      %v1790 = vpop.permute.xlu0 %1789
      %1792 = vset.pattern.permute.xlu0 11
      %1793 = vperm.xlu0 %1792, %v250
      %v1794 = vpop.permute.xlu0 %1793
      %v1796 = vmul.f32 %v1790, %v395
      %v1797 = vmul.f32 %v1790, %v396
      %v1798 = vmul.f32 %v1790, %v397
      %v1799 = vmul.f32 %v1794, %v398
      %v1800 = vmul.f32 %v1794, %v399
      %v1801 = vmul.f32 %v1794, %v400
      %1808 = vrot.lane.b32.xlu0 %v1796, 112
      %v1809 = vpop.permute.xlu0 %1808
      %1810 = vrot.lane.b32.xlu0 %v1797, 112
      %v1811 = vpop.permute.xlu0 %1810
      %1812 = vrot.lane.b32.xlu0 %v1798, 112
      %v1813 = vpop.permute.xlu0 %1812
      %1814 = vrot.lane.b32.xlu0 %v1799, 112
      %v1815 = vpop.permute.xlu0 %1814
      %1816 = vrot.lane.b32.xlu0 %v1800, 112
      %v1817 = vpop.permute.xlu0 %1816
      %1818 = vrot.lane.b32.xlu0 %v1801, 112
      %v1819 = vpop.permute.xlu0 %1818
      %v1820 = vsel %vm449, %v1809, %v1811
      %v1821 = vsel %vm449, %v1811, %v1813
      %v1822 = vsel %vm449, %v1815, %v1817
      %v1823 = vsel %vm449, %v1817, %v1819
      %v1830 = vadd.f32 %v1782, %v1820
      %v1831 = vadd.f32 %v1783, %v1821
      %v1832 = vadd.f32 %v1784, %v1813
      %v1833 = vadd.f32 %v1785, %v1822
      %v1834 = vadd.f32 %v1786, %v1823
      %v1835 = vadd.f32 %v1787, %v1819
      %1836 = vset.pattern.permute.xlu0 18
      %1837 = vperm.xlu0 %1836, %v249
      %v1838 = vpop.permute.xlu0 %1837
      %1840 = vset.pattern.permute.xlu0 18
      %1841 = vperm.xlu0 %1840, %v250
      %v1842 = vpop.permute.xlu0 %1841
      %v1844 = vmul.f32 %v1838, %v395
      %v1845 = vmul.f32 %v1838, %v396
      %v1846 = vmul.f32 %v1838, %v397
      %v1847 = vmul.f32 %v1842, %v398
      %v1848 = vmul.f32 %v1842, %v399
      %v1849 = vmul.f32 %v1842, %v400
      %1856 = vrot.lane.b32.xlu0 %v1844, 96
      %v1857 = vpop.permute.xlu0 %1856
      %1858 = vrot.lane.b32.xlu0 %v1845, 96
      %v1859 = vpop.permute.xlu0 %1858
      %1860 = vrot.lane.b32.xlu0 %v1846, 96
      %v1861 = vpop.permute.xlu0 %1860
      %1862 = vrot.lane.b32.xlu0 %v1847, 96
      %v1863 = vpop.permute.xlu0 %1862
      %1864 = vrot.lane.b32.xlu0 %v1848, 96
      %v1865 = vpop.permute.xlu0 %1864
      %1866 = vrot.lane.b32.xlu0 %v1849, 96
      %v1867 = vpop.permute.xlu0 %1866
      %v1868 = vsel %vm498, %v1857, %v1859
      %v1869 = vsel %vm498, %v1859, %v1861
      %v1870 = vsel %vm498, %v1863, %v1865
      %v1871 = vsel %vm498, %v1865, %v1867
      %v1878 = vadd.f32 %v1830, %v1868
      %v1879 = vadd.f32 %v1831, %v1869
      %v1880 = vadd.f32 %v1832, %v1861
      %v1881 = vadd.f32 %v1833, %v1870
      %v1882 = vadd.f32 %v1834, %v1871
      %v1883 = vadd.f32 %v1835, %v1867
      %1884 = vset.pattern.permute.xlu0 25
      %1885 = vperm.xlu0 %1884, %v249
      %v1886 = vpop.permute.xlu0 %1885
      %1888 = vset.pattern.permute.xlu0 25
      %1889 = vperm.xlu0 %1888, %v250
      %v1890 = vpop.permute.xlu0 %1889
      %v1892 = vmul.f32 %v1886, %v564
      %v1893 = vmul.f32 %v1886, %v565
      %v1894 = vmul.f32 %v1886, %v566
      %v1895 = vmul.f32 %v1890, %v567
      %v1896 = vmul.f32 %v1890, %v568
      %v1897 = vmul.f32 %v1890, %v569
      %1904 = vrot.lane.b32.xlu0 %v1892, 80
      %v1905 = vpop.permute.xlu0 %1904
      %1906 = vrot.lane.b32.xlu0 %v1893, 80
      %v1907 = vpop.permute.xlu0 %1906
      %1908 = vrot.lane.b32.xlu0 %v1894, 80
      %v1909 = vpop.permute.xlu0 %1908
      %1910 = vrot.lane.b32.xlu0 %v1895, 80
      %v1911 = vpop.permute.xlu0 %1910
      %1912 = vrot.lane.b32.xlu0 %v1896, 80
      %v1913 = vpop.permute.xlu0 %1912
      %1914 = vrot.lane.b32.xlu0 %v1897, 80
      %v1915 = vpop.permute.xlu0 %1914
      %v1916 = vsel %vm547, %v1905, %v1907
      %v1917 = vsel %vm547, %v1907, %v1909
      %v1918 = vsel %vm547, %v1911, %v1913
      %v1919 = vsel %vm547, %v1913, %v1915
      %v1926 = vadd.f32 %v1878, %v1905
      %v1927 = vadd.f32 %v1879, %v1916
      %v1928 = vadd.f32 %v1880, %v1917
      %v1929 = vadd.f32 %v1881, %v1911
      %v1930 = vadd.f32 %v1882, %v1918
      %v1931 = vadd.f32 %v1883, %v1919
      %1932 = vset.pattern.permute.xlu0 32
      %1933 = vperm.xlu0 %1932, %v249
      %v1934 = vpop.permute.xlu0 %1933
      %1936 = vset.pattern.permute.xlu0 32
      %1937 = vperm.xlu0 %1936, %v250
      %v1938 = vpop.permute.xlu0 %1937
      %v1940 = vmul.f32 %v1934, %v564
      %v1941 = vmul.f32 %v1934, %v565
      %v1942 = vmul.f32 %v1934, %v566
      %v1943 = vmul.f32 %v1938, %v567
      %v1944 = vmul.f32 %v1938, %v568
      %v1945 = vmul.f32 %v1938, %v569
      %1952 = vrot.lane.b32.xlu0 %v1940, 64
      %v1953 = vpop.permute.xlu0 %1952
      %1954 = vrot.lane.b32.xlu0 %v1941, 64
      %v1955 = vpop.permute.xlu0 %1954
      %1956 = vrot.lane.b32.xlu0 %v1942, 64
      %v1957 = vpop.permute.xlu0 %1956
      %1958 = vrot.lane.b32.xlu0 %v1943, 64
      %v1959 = vpop.permute.xlu0 %1958
      %1960 = vrot.lane.b32.xlu0 %v1944, 64
      %v1961 = vpop.permute.xlu0 %1960
      %1962 = vrot.lane.b32.xlu0 %v1945, 64
      %v1963 = vpop.permute.xlu0 %1962
      %v1964 = vsel %vm602, %v1953, %v1955
      %v1965 = vsel %vm602, %v1955, %v1957
      %v1966 = vsel %vm602, %v1959, %v1961
      %v1967 = vsel %vm602, %v1961, %v1963
      %v1974 = vadd.f32 %v1926, %v1953
      %v1975 = vadd.f32 %v1927, %v1964
      %v1976 = vadd.f32 %v1928, %v1965
      %v1977 = vadd.f32 %v1929, %v1959
      %v1978 = vadd.f32 %v1930, %v1966
      %v1979 = vadd.f32 %v1931, %v1967
      %1980 = vset.pattern.permute.xlu0 39
      %1981 = vperm.xlu0 %1980, %v249
      %v1982 = vpop.permute.xlu0 %1981
      %1984 = vset.pattern.permute.xlu0 39
      %1985 = vperm.xlu0 %1984, %v250
      %v1986 = vpop.permute.xlu0 %1985
      %v1988 = vmul.f32 %v1982, %v564
      %v1989 = vmul.f32 %v1982, %v565
      %v1990 = vmul.f32 %v1982, %v566
      %v1991 = vmul.f32 %v1986, %v567
      %v1992 = vmul.f32 %v1986, %v568
      %v1993 = vmul.f32 %v1986, %v569
      %2000 = vrot.lane.b32.xlu0 %v1988, 48
      %v2001 = vpop.permute.xlu0 %2000
      %2002 = vrot.lane.b32.xlu0 %v1989, 48
      %v2003 = vpop.permute.xlu0 %2002
      %2004 = vrot.lane.b32.xlu0 %v1990, 48
      %v2005 = vpop.permute.xlu0 %2004
      %2006 = vrot.lane.b32.xlu0 %v1991, 48
      %v2007 = vpop.permute.xlu0 %2006
      %2008 = vrot.lane.b32.xlu0 %v1992, 48
      %v2009 = vpop.permute.xlu0 %2008
      %2010 = vrot.lane.b32.xlu0 %v1993, 48
      %v2011 = vpop.permute.xlu0 %2010
      %v2012 = vsel %vm651, %v2001, %v2003
      %v2013 = vsel %vm651, %v2003, %v2005
      %v2014 = vsel %vm651, %v2007, %v2009
      %v2015 = vsel %vm651, %v2009, %v2011
      %v2022 = vadd.f32 %v1974, %v2001
      %v2023 = vadd.f32 %v1975, %v2012
      %v2024 = vadd.f32 %v1976, %v2013
      %v2025 = vadd.f32 %v1977, %v2007
      %v2026 = vadd.f32 %v1978, %v2014
      %v2027 = vadd.f32 %v1979, %v2015
      %2028 = vset.pattern.permute.xlu0 46
      %2029 = vperm.xlu0 %2028, %v249
      %v2030 = vpop.permute.xlu0 %2029
      %2032 = vset.pattern.permute.xlu0 46
      %2033 = vperm.xlu0 %2032, %v250
      %v2034 = vpop.permute.xlu0 %2033
      %v2036 = vmul.f32 %v2030, %v564
      %v2037 = vmul.f32 %v2030, %v565
      %v2038 = vmul.f32 %v2030, %v566
      %v2039 = vmul.f32 %v2034, %v567
      %v2040 = vmul.f32 %v2034, %v568
      %v2041 = vmul.f32 %v2034, %v569
      %2048 = vrot.lane.b32.xlu0 %v2036, 32
      %v2049 = vpop.permute.xlu0 %2048
      %2050 = vrot.lane.b32.xlu0 %v2037, 32
      %v2051 = vpop.permute.xlu0 %2050
      %2052 = vrot.lane.b32.xlu0 %v2038, 32
      %v2053 = vpop.permute.xlu0 %2052
      %2054 = vrot.lane.b32.xlu0 %v2039, 32
      %v2055 = vpop.permute.xlu0 %2054
      %2056 = vrot.lane.b32.xlu0 %v2040, 32
      %v2057 = vpop.permute.xlu0 %2056
      %2058 = vrot.lane.b32.xlu0 %v2041, 32
      %v2059 = vpop.permute.xlu0 %2058
      %v2060 = vsel %vm700, %v2049, %v2051
      %v2061 = vsel %vm700, %v2051, %v2053
      %v2062 = vsel %vm700, %v2055, %v2057
      %v2063 = vsel %vm700, %v2057, %v2059
      %v2070 = vadd.f32 %v2022, %v2049
      %v2071 = vadd.f32 %v2023, %v2060
      %v2072 = vadd.f32 %v2024, %v2061
      %v2073 = vadd.f32 %v2025, %v2055
      %v2074 = vadd.f32 %v2026, %v2062
      %v2075 = vadd.f32 %v2027, %v2063
      %vm2076 = vcmp.ge.s32.totalorder %v393, 4294967295
      %vm2077 = vcmp.ge.s32.totalorder %v394, 4294967295
      %vm2078 = vcmp.lt.s32.totalorder %v393, 15
      %vm2079 = vcmp.lt.s32.totalorder %v394, 15
      %vm2080 = vmand %vm2076, %vm2078
      %vm2081 = vmand %vm2077, %vm2079
      %v2082 = vsel %vm2080, 1, 0
      %v2083 = vsel %vm2081, 1, 0
      %vm2084 = vcmp.eq.s32.totalorder %v2082, 1
      %vm2085 = vcmp.eq.s32.totalorder %v2083, 1
      %2092 = vrot.lane.b32.xlu0 %v2070, 47
      %v2093 = vpop.permute.xlu0 %2092
      %2094 = vrot.lane.b32.xlu0 %v2071, 47
      %v2095 = vpop.permute.xlu0 %2094
      %2096 = vrot.lane.b32.xlu0 %v2072, 47
      %v2097 = vpop.permute.xlu0 %2096
      %2098 = vrot.lane.b32.xlu0 %v2073, 47
      %v2099 = vpop.permute.xlu0 %2098
      %2100 = vrot.lane.b32.xlu0 %v2074, 47
      %v2101 = vpop.permute.xlu0 %2100
      %2102 = vrot.lane.b32.xlu0 %v2075, 47
      %v2103 = vpop.permute.xlu0 %2102
      %vm2104 = vcmask 384000
      %v2105 = vsel %vm2104, %v2093, %v2095
      %v2106 = vsel %vm2104, %v2095, %v2097
      %v2107 = vsel %vm2104, %v2099, %v2101
      %v2108 = vsel %vm2104, %v2101, %v2103
      %v2113 = vsel %vm2084, %v2105, 0.0
      %v2114 = vsel %vm2085, %v2106, 0.0
      %v2115 = vsel %vm2084, %v2107, 0.0
      %v2116 = vsel %vm2085, %v2108, 0.0
      %v2117 = vadd.f32 %v1770, %v2113
      %v2118 = vadd.f32 %v1771, %v2114
      %v2119 = vadd.f32 %v1772, %v2115
      %v2120 = vadd.f32 %v1773, %v2116
      %2121 = vset.pattern.permute.xlu0 5
      %2122 = vperm.xlu0 %2121, %v249
      %v2123 = vpop.permute.xlu0 %2122
      %2125 = vset.pattern.permute.xlu0 5
      %2126 = vperm.xlu0 %2125, %v250
      %v2127 = vpop.permute.xlu0 %2126
      %v2129 = vmul.f32 %v2123, %v395
      %v2130 = vmul.f32 %v2123, %v396
      %v2131 = vmul.f32 %v2123, %v397
      %v2132 = vmul.f32 %v2127, %v398
      %v2133 = vmul.f32 %v2127, %v399
      %v2134 = vmul.f32 %v2127, %v400
      %2135 = vset.pattern.permute.xlu0 12
      %2136 = vperm.xlu0 %2135, %v249
      %v2137 = vpop.permute.xlu0 %2136
      %2139 = vset.pattern.permute.xlu0 12
      %2140 = vperm.xlu0 %2139, %v250
      %v2141 = vpop.permute.xlu0 %2140
      %v2143 = vmul.f32 %v2137, %v395
      %v2144 = vmul.f32 %v2137, %v396
      %v2145 = vmul.f32 %v2137, %v397
      %v2146 = vmul.f32 %v2141, %v398
      %v2147 = vmul.f32 %v2141, %v399
      %v2148 = vmul.f32 %v2141, %v400
      %2155 = vrot.lane.b32.xlu0 %v2143, 112
      %v2156 = vpop.permute.xlu0 %2155
      %2157 = vrot.lane.b32.xlu0 %v2144, 112
      %v2158 = vpop.permute.xlu0 %2157
      %2159 = vrot.lane.b32.xlu0 %v2145, 112
      %v2160 = vpop.permute.xlu0 %2159
      %2161 = vrot.lane.b32.xlu0 %v2146, 112
      %v2162 = vpop.permute.xlu0 %2161
      %2163 = vrot.lane.b32.xlu0 %v2147, 112
      %v2164 = vpop.permute.xlu0 %2163
      %2165 = vrot.lane.b32.xlu0 %v2148, 112
      %v2166 = vpop.permute.xlu0 %2165
      %v2167 = vsel %vm449, %v2156, %v2158
      %v2168 = vsel %vm449, %v2158, %v2160
      %v2169 = vsel %vm449, %v2162, %v2164
      %v2170 = vsel %vm449, %v2164, %v2166
      %v2177 = vadd.f32 %v2129, %v2167
      %v2178 = vadd.f32 %v2130, %v2168
      %v2179 = vadd.f32 %v2131, %v2160
      %v2180 = vadd.f32 %v2132, %v2169
      %v2181 = vadd.f32 %v2133, %v2170
      %v2182 = vadd.f32 %v2134, %v2166
      %2183 = vset.pattern.permute.xlu0 19
      %2184 = vperm.xlu0 %2183, %v249
      %v2185 = vpop.permute.xlu0 %2184
      %2187 = vset.pattern.permute.xlu0 19
      %2188 = vperm.xlu0 %2187, %v250
      %v2189 = vpop.permute.xlu0 %2188
      %v2191 = vmul.f32 %v2185, %v395
      %v2192 = vmul.f32 %v2185, %v396
      %v2193 = vmul.f32 %v2185, %v397
      %v2194 = vmul.f32 %v2189, %v398
      %v2195 = vmul.f32 %v2189, %v399
      %v2196 = vmul.f32 %v2189, %v400
      %2203 = vrot.lane.b32.xlu0 %v2191, 96
      %v2204 = vpop.permute.xlu0 %2203
      %2205 = vrot.lane.b32.xlu0 %v2192, 96
      %v2206 = vpop.permute.xlu0 %2205
      %2207 = vrot.lane.b32.xlu0 %v2193, 96
      %v2208 = vpop.permute.xlu0 %2207
      %2209 = vrot.lane.b32.xlu0 %v2194, 96
      %v2210 = vpop.permute.xlu0 %2209
      %2211 = vrot.lane.b32.xlu0 %v2195, 96
      %v2212 = vpop.permute.xlu0 %2211
      %2213 = vrot.lane.b32.xlu0 %v2196, 96
      %v2214 = vpop.permute.xlu0 %2213
      %v2215 = vsel %vm498, %v2204, %v2206
      %v2216 = vsel %vm498, %v2206, %v2208
      %v2217 = vsel %vm498, %v2210, %v2212
      %v2218 = vsel %vm498, %v2212, %v2214
      %v2225 = vadd.f32 %v2177, %v2215
      %v2226 = vadd.f32 %v2178, %v2216
      %v2227 = vadd.f32 %v2179, %v2208
      %v2228 = vadd.f32 %v2180, %v2217
      %v2229 = vadd.f32 %v2181, %v2218
      %v2230 = vadd.f32 %v2182, %v2214
      %2231 = vset.pattern.permute.xlu0 26
      %2232 = vperm.xlu0 %2231, %v249
      %v2233 = vpop.permute.xlu0 %2232
      %2235 = vset.pattern.permute.xlu0 26
      %2236 = vperm.xlu0 %2235, %v250
      %v2237 = vpop.permute.xlu0 %2236
      %v2239 = vmul.f32 %v2233, %v564
      %v2240 = vmul.f32 %v2233, %v565
      %v2241 = vmul.f32 %v2233, %v566
      %v2242 = vmul.f32 %v2237, %v567
      %v2243 = vmul.f32 %v2237, %v568
      %v2244 = vmul.f32 %v2237, %v569
      %2251 = vrot.lane.b32.xlu0 %v2239, 80
      %v2252 = vpop.permute.xlu0 %2251
      %2253 = vrot.lane.b32.xlu0 %v2240, 80
      %v2254 = vpop.permute.xlu0 %2253
      %2255 = vrot.lane.b32.xlu0 %v2241, 80
      %v2256 = vpop.permute.xlu0 %2255
      %2257 = vrot.lane.b32.xlu0 %v2242, 80
      %v2258 = vpop.permute.xlu0 %2257
      %2259 = vrot.lane.b32.xlu0 %v2243, 80
      %v2260 = vpop.permute.xlu0 %2259
      %2261 = vrot.lane.b32.xlu0 %v2244, 80
      %v2262 = vpop.permute.xlu0 %2261
      %v2263 = vsel %vm547, %v2252, %v2254
      %v2264 = vsel %vm547, %v2254, %v2256
      %v2265 = vsel %vm547, %v2258, %v2260
      %v2266 = vsel %vm547, %v2260, %v2262
      %v2273 = vadd.f32 %v2225, %v2252
      %v2274 = vadd.f32 %v2226, %v2263
      %v2275 = vadd.f32 %v2227, %v2264
      %v2276 = vadd.f32 %v2228, %v2258
      %v2277 = vadd.f32 %v2229, %v2265
      %v2278 = vadd.f32 %v2230, %v2266
      %2279 = vset.pattern.permute.xlu0 33
      %2280 = vperm.xlu0 %2279, %v249
      %v2281 = vpop.permute.xlu0 %2280
      %2283 = vset.pattern.permute.xlu0 33
      %2284 = vperm.xlu0 %2283, %v250
      %v2285 = vpop.permute.xlu0 %2284
      %v2287 = vmul.f32 %v2281, %v564
      %v2288 = vmul.f32 %v2281, %v565
      %v2289 = vmul.f32 %v2281, %v566
      %v2290 = vmul.f32 %v2285, %v567
      %v2291 = vmul.f32 %v2285, %v568
      %v2292 = vmul.f32 %v2285, %v569
      %2299 = vrot.lane.b32.xlu0 %v2287, 64
      %v2300 = vpop.permute.xlu0 %2299
      %2301 = vrot.lane.b32.xlu0 %v2288, 64
      %v2302 = vpop.permute.xlu0 %2301
      %2303 = vrot.lane.b32.xlu0 %v2289, 64
      %v2304 = vpop.permute.xlu0 %2303
      %2305 = vrot.lane.b32.xlu0 %v2290, 64
      %v2306 = vpop.permute.xlu0 %2305
      %2307 = vrot.lane.b32.xlu0 %v2291, 64
      %v2308 = vpop.permute.xlu0 %2307
      %2309 = vrot.lane.b32.xlu0 %v2292, 64
      %v2310 = vpop.permute.xlu0 %2309
      %v2311 = vsel %vm602, %v2300, %v2302
      %v2312 = vsel %vm602, %v2302, %v2304
      %v2313 = vsel %vm602, %v2306, %v2308
      %v2314 = vsel %vm602, %v2308, %v2310
      %v2321 = vadd.f32 %v2273, %v2300
      %v2322 = vadd.f32 %v2274, %v2311
      %v2323 = vadd.f32 %v2275, %v2312
      %v2324 = vadd.f32 %v2276, %v2306
      %v2325 = vadd.f32 %v2277, %v2313
      %v2326 = vadd.f32 %v2278, %v2314
      %2327 = vset.pattern.permute.xlu0 40
      %2328 = vperm.xlu0 %2327, %v249
      %v2329 = vpop.permute.xlu0 %2328
      %2331 = vset.pattern.permute.xlu0 40
      %2332 = vperm.xlu0 %2331, %v250
      %v2333 = vpop.permute.xlu0 %2332
      %v2335 = vmul.f32 %v2329, %v564
      %v2336 = vmul.f32 %v2329, %v565
      %v2337 = vmul.f32 %v2329, %v566
      %v2338 = vmul.f32 %v2333, %v567
      %v2339 = vmul.f32 %v2333, %v568
      %v2340 = vmul.f32 %v2333, %v569
      %2347 = vrot.lane.b32.xlu0 %v2335, 48
      %v2348 = vpop.permute.xlu0 %2347
      %2349 = vrot.lane.b32.xlu0 %v2336, 48
      %v2350 = vpop.permute.xlu0 %2349
      %2351 = vrot.lane.b32.xlu0 %v2337, 48
      %v2352 = vpop.permute.xlu0 %2351
      %2353 = vrot.lane.b32.xlu0 %v2338, 48
      %v2354 = vpop.permute.xlu0 %2353
      %2355 = vrot.lane.b32.xlu0 %v2339, 48
      %v2356 = vpop.permute.xlu0 %2355
      %2357 = vrot.lane.b32.xlu0 %v2340, 48
      %v2358 = vpop.permute.xlu0 %2357
      %v2359 = vsel %vm651, %v2348, %v2350
      %v2360 = vsel %vm651, %v2350, %v2352
      %v2361 = vsel %vm651, %v2354, %v2356
      %v2362 = vsel %vm651, %v2356, %v2358
      %v2369 = vadd.f32 %v2321, %v2348
      %v2370 = vadd.f32 %v2322, %v2359
      %v2371 = vadd.f32 %v2323, %v2360
      %v2372 = vadd.f32 %v2324, %v2354
      %v2373 = vadd.f32 %v2325, %v2361
      %v2374 = vadd.f32 %v2326, %v2362
      %2375 = vset.pattern.permute.xlu0 47
      %2376 = vperm.xlu0 %2375, %v249
      %v2377 = vpop.permute.xlu0 %2376
      %2379 = vset.pattern.permute.xlu0 47
      %2380 = vperm.xlu0 %2379, %v250
      %v2381 = vpop.permute.xlu0 %2380
      %v2383 = vmul.f32 %v2377, %v564
      %v2384 = vmul.f32 %v2377, %v565
      %v2385 = vmul.f32 %v2377, %v566
      %v2386 = vmul.f32 %v2381, %v567
      %v2387 = vmul.f32 %v2381, %v568
      %v2388 = vmul.f32 %v2381, %v569
      %2395 = vrot.lane.b32.xlu0 %v2383, 32
      %v2396 = vpop.permute.xlu0 %2395
      %2397 = vrot.lane.b32.xlu0 %v2384, 32
      %v2398 = vpop.permute.xlu0 %2397
      %2399 = vrot.lane.b32.xlu0 %v2385, 32
      %v2400 = vpop.permute.xlu0 %2399
      %2401 = vrot.lane.b32.xlu0 %v2386, 32
      %v2402 = vpop.permute.xlu0 %2401
      %2403 = vrot.lane.b32.xlu0 %v2387, 32
      %v2404 = vpop.permute.xlu0 %2403
      %2405 = vrot.lane.b32.xlu0 %v2388, 32
      %v2406 = vpop.permute.xlu0 %2405
      %v2407 = vsel %vm700, %v2396, %v2398
      %v2408 = vsel %vm700, %v2398, %v2400
      %v2409 = vsel %vm700, %v2402, %v2404
      %v2410 = vsel %vm700, %v2404, %v2406
      %v2417 = vadd.f32 %v2369, %v2396
      %v2418 = vadd.f32 %v2370, %v2407
      %v2419 = vadd.f32 %v2371, %v2408
      %v2420 = vadd.f32 %v2372, %v2402
      %v2421 = vadd.f32 %v2373, %v2409
      %v2422 = vadd.f32 %v2374, %v2410
      %vm2423 = vcmp.ge.s32.totalorder %v393, 4294967294
      %vm2424 = vcmp.ge.s32.totalorder %v394, 4294967294
      %vm2425 = vcmp.lt.s32.totalorder %v393, 14
      %vm2426 = vcmp.lt.s32.totalorder %v394, 14
      %vm2427 = vmand %vm2423, %vm2425
      %vm2428 = vmand %vm2424, %vm2426
      %v2429 = vsel %vm2427, 1, 0
      %v2430 = vsel %vm2428, 1, 0
      %vm2431 = vcmp.eq.s32.totalorder %v2429, 1
      %vm2432 = vcmp.eq.s32.totalorder %v2430, 1
      %2439 = vrot.lane.b32.xlu0 %v2417, 46
      %v2440 = vpop.permute.xlu0 %2439
      %2441 = vrot.lane.b32.xlu0 %v2418, 46
      %v2442 = vpop.permute.xlu0 %2441
      %2443 = vrot.lane.b32.xlu0 %v2419, 46
      %v2444 = vpop.permute.xlu0 %2443
      %2445 = vrot.lane.b32.xlu0 %v2420, 46
      %v2446 = vpop.permute.xlu0 %2445
      %2447 = vrot.lane.b32.xlu0 %v2421, 46
      %v2448 = vpop.permute.xlu0 %2447
      %2449 = vrot.lane.b32.xlu0 %v2422, 46
      %v2450 = vpop.permute.xlu0 %2449
      %vm2451 = vcmask 375808
      %v2452 = vsel %vm2451, %v2440, %v2442
      %v2453 = vsel %vm2451, %v2442, %v2444
      %v2454 = vsel %vm2451, %v2446, %v2448
      %v2455 = vsel %vm2451, %v2448, %v2450
      %v2460 = vsel %vm2431, %v2452, 0.0
      %v2461 = vsel %vm2432, %v2453, 0.0
      %v2462 = vsel %vm2431, %v2454, 0.0
      %v2463 = vsel %vm2432, %v2455, 0.0
      %v2464 = vadd.f32 %v2117, %v2460
      %v2465 = vadd.f32 %v2118, %v2461
      %v2466 = vadd.f32 %v2119, %v2462
      %v2467 = vadd.f32 %v2120, %v2463
      %2468 = vset.pattern.permute.xlu0 6
      %2469 = vperm.xlu0 %2468, %v249
      %v2470 = vpop.permute.xlu0 %2469
      %2472 = vset.pattern.permute.xlu0 6
      %2473 = vperm.xlu0 %2472, %v250
      %v2474 = vpop.permute.xlu0 %2473
      %v2476 = vmul.f32 %v2470, %v395
      %v2477 = vmul.f32 %v2470, %v396
      %v2478 = vmul.f32 %v2470, %v397
      %v2479 = vmul.f32 %v2474, %v398
      %v2480 = vmul.f32 %v2474, %v399
      %v2481 = vmul.f32 %v2474, %v400
      %2482 = vset.pattern.permute.xlu0 13
      %2483 = vperm.xlu0 %2482, %v249
      %v2484 = vpop.permute.xlu0 %2483
      %2486 = vset.pattern.permute.xlu0 13
      %2487 = vperm.xlu0 %2486, %v250
      %v2488 = vpop.permute.xlu0 %2487
      %v2490 = vmul.f32 %v2484, %v395
      %v2491 = vmul.f32 %v2484, %v396
      %v2492 = vmul.f32 %v2484, %v397
      %v2493 = vmul.f32 %v2488, %v398
      %v2494 = vmul.f32 %v2488, %v399
      %v2495 = vmul.f32 %v2488, %v400
      %2502 = vrot.lane.b32.xlu0 %v2490, 112
      %v2503 = vpop.permute.xlu0 %2502
      %2504 = vrot.lane.b32.xlu0 %v2491, 112
      %v2505 = vpop.permute.xlu0 %2504
      %2506 = vrot.lane.b32.xlu0 %v2492, 112
      %v2507 = vpop.permute.xlu0 %2506
      %2508 = vrot.lane.b32.xlu0 %v2493, 112
      %v2509 = vpop.permute.xlu0 %2508
      %2510 = vrot.lane.b32.xlu0 %v2494, 112
      %v2511 = vpop.permute.xlu0 %2510
      %2512 = vrot.lane.b32.xlu0 %v2495, 112
      %v2513 = vpop.permute.xlu0 %2512
      %v2514 = vsel %vm449, %v2503, %v2505
      %v2515 = vsel %vm449, %v2505, %v2507
      %v2516 = vsel %vm449, %v2509, %v2511
      %v2517 = vsel %vm449, %v2511, %v2513
      %v2524 = vadd.f32 %v2476, %v2514
      %v2525 = vadd.f32 %v2477, %v2515
      %v2526 = vadd.f32 %v2478, %v2507
      %v2527 = vadd.f32 %v2479, %v2516
      %v2528 = vadd.f32 %v2480, %v2517
      %v2529 = vadd.f32 %v2481, %v2513
      %2530 = vset.pattern.permute.xlu0 20
      %2531 = vperm.xlu0 %2530, %v249
      %v2532 = vpop.permute.xlu0 %2531
      %2534 = vset.pattern.permute.xlu0 20
      %2535 = vperm.xlu0 %2534, %v250
      %v2536 = vpop.permute.xlu0 %2535
      %v2538 = vmul.f32 %v2532, %v395
      %v2539 = vmul.f32 %v2532, %v396
      %v2540 = vmul.f32 %v2532, %v397
      %v2541 = vmul.f32 %v2536, %v398
      %v2542 = vmul.f32 %v2536, %v399
      %v2543 = vmul.f32 %v2536, %v400
      %2550 = vrot.lane.b32.xlu0 %v2538, 96
      %v2551 = vpop.permute.xlu0 %2550
      %2552 = vrot.lane.b32.xlu0 %v2539, 96
      %v2553 = vpop.permute.xlu0 %2552
      %2554 = vrot.lane.b32.xlu0 %v2540, 96
      %v2555 = vpop.permute.xlu0 %2554
      %2556 = vrot.lane.b32.xlu0 %v2541, 96
      %v2557 = vpop.permute.xlu0 %2556
      %2558 = vrot.lane.b32.xlu0 %v2542, 96
      %v2559 = vpop.permute.xlu0 %2558
      %2560 = vrot.lane.b32.xlu0 %v2543, 96
      %v2561 = vpop.permute.xlu0 %2560
      %v2562 = vsel %vm498, %v2551, %v2553
      %v2563 = vsel %vm498, %v2553, %v2555
      %v2564 = vsel %vm498, %v2557, %v2559
      %v2565 = vsel %vm498, %v2559, %v2561
      %v2572 = vadd.f32 %v2524, %v2562
      %v2573 = vadd.f32 %v2525, %v2563
      %v2574 = vadd.f32 %v2526, %v2555
      %v2575 = vadd.f32 %v2527, %v2564
      %v2576 = vadd.f32 %v2528, %v2565
      %v2577 = vadd.f32 %v2529, %v2561
      %2578 = vset.pattern.permute.xlu0 27
      %2579 = vperm.xlu0 %2578, %v249
      %v2580 = vpop.permute.xlu0 %2579
      %2582 = vset.pattern.permute.xlu0 27
      %2583 = vperm.xlu0 %2582, %v250
      %v2584 = vpop.permute.xlu0 %2583
      %v2586 = vmul.f32 %v2580, %v564
      %v2587 = vmul.f32 %v2580, %v565
      %v2588 = vmul.f32 %v2580, %v566
      %v2589 = vmul.f32 %v2584, %v567
      %v2590 = vmul.f32 %v2584, %v568
      %v2591 = vmul.f32 %v2584, %v569
      %2598 = vrot.lane.b32.xlu0 %v2586, 80
      %v2599 = vpop.permute.xlu0 %2598
      %2600 = vrot.lane.b32.xlu0 %v2587, 80
      %v2601 = vpop.permute.xlu0 %2600
      %2602 = vrot.lane.b32.xlu0 %v2588, 80
      %v2603 = vpop.permute.xlu0 %2602
      %2604 = vrot.lane.b32.xlu0 %v2589, 80
      %v2605 = vpop.permute.xlu0 %2604
      %2606 = vrot.lane.b32.xlu0 %v2590, 80
      %v2607 = vpop.permute.xlu0 %2606
      %2608 = vrot.lane.b32.xlu0 %v2591, 80
      %v2609 = vpop.permute.xlu0 %2608
      %v2610 = vsel %vm547, %v2599, %v2601
      %v2611 = vsel %vm547, %v2601, %v2603
      %v2612 = vsel %vm547, %v2605, %v2607
      %v2613 = vsel %vm547, %v2607, %v2609
      %v2620 = vadd.f32 %v2572, %v2599
      %v2621 = vadd.f32 %v2573, %v2610
      %v2622 = vadd.f32 %v2574, %v2611
      %v2623 = vadd.f32 %v2575, %v2605
      %v2624 = vadd.f32 %v2576, %v2612
      %v2625 = vadd.f32 %v2577, %v2613
      %2626 = vset.pattern.permute.xlu0 34
      %2627 = vperm.xlu0 %2626, %v249
      %v2628 = vpop.permute.xlu0 %2627
      %2630 = vset.pattern.permute.xlu0 34
      %2631 = vperm.xlu0 %2630, %v250
      %v2632 = vpop.permute.xlu0 %2631
      %v2634 = vmul.f32 %v2628, %v564
      %v2635 = vmul.f32 %v2628, %v565
      %v2636 = vmul.f32 %v2628, %v566
      %v2637 = vmul.f32 %v2632, %v567
      %v2638 = vmul.f32 %v2632, %v568
      %v2639 = vmul.f32 %v2632, %v569
      %2646 = vrot.lane.b32.xlu0 %v2634, 64
      %v2647 = vpop.permute.xlu0 %2646
      %2648 = vrot.lane.b32.xlu0 %v2635, 64
      %v2649 = vpop.permute.xlu0 %2648
      %2650 = vrot.lane.b32.xlu0 %v2636, 64
      %v2651 = vpop.permute.xlu0 %2650
      %2652 = vrot.lane.b32.xlu0 %v2637, 64
      %v2653 = vpop.permute.xlu0 %2652
      %2654 = vrot.lane.b32.xlu0 %v2638, 64
      %v2655 = vpop.permute.xlu0 %2654
      %2656 = vrot.lane.b32.xlu0 %v2639, 64
      %v2657 = vpop.permute.xlu0 %2656
      %v2658 = vsel %vm602, %v2647, %v2649
      %v2659 = vsel %vm602, %v2649, %v2651
      %v2660 = vsel %vm602, %v2653, %v2655
      %v2661 = vsel %vm602, %v2655, %v2657
      %v2668 = vadd.f32 %v2620, %v2647
      %v2669 = vadd.f32 %v2621, %v2658
      %v2670 = vadd.f32 %v2622, %v2659
      %v2671 = vadd.f32 %v2623, %v2653
      %v2672 = vadd.f32 %v2624, %v2660
      %v2673 = vadd.f32 %v2625, %v2661
      %2674 = vset.pattern.permute.xlu0 41
      %2675 = vperm.xlu0 %2674, %v249
      %v2676 = vpop.permute.xlu0 %2675
      %2678 = vset.pattern.permute.xlu0 41
      %2679 = vperm.xlu0 %2678, %v250
      %v2680 = vpop.permute.xlu0 %2679
      %v2682 = vmul.f32 %v2676, %v564
      %v2683 = vmul.f32 %v2676, %v565
      %v2684 = vmul.f32 %v2676, %v566
      %v2685 = vmul.f32 %v2680, %v567
      %v2686 = vmul.f32 %v2680, %v568
      %v2687 = vmul.f32 %v2680, %v569
      %2694 = vrot.lane.b32.xlu0 %v2682, 48
      %v2695 = vpop.permute.xlu0 %2694
      %2696 = vrot.lane.b32.xlu0 %v2683, 48
      %v2697 = vpop.permute.xlu0 %2696
      %2698 = vrot.lane.b32.xlu0 %v2684, 48
      %v2699 = vpop.permute.xlu0 %2698
      %2700 = vrot.lane.b32.xlu0 %v2685, 48
      %v2701 = vpop.permute.xlu0 %2700
      %2702 = vrot.lane.b32.xlu0 %v2686, 48
      %v2703 = vpop.permute.xlu0 %2702
      %2704 = vrot.lane.b32.xlu0 %v2687, 48
      %v2705 = vpop.permute.xlu0 %2704
      %v2706 = vsel %vm651, %v2695, %v2697
      %v2707 = vsel %vm651, %v2697, %v2699
      %v2708 = vsel %vm651, %v2701, %v2703
      %v2709 = vsel %vm651, %v2703, %v2705
      %v2716 = vadd.f32 %v2668, %v2695
      %v2717 = vadd.f32 %v2669, %v2706
      %v2718 = vadd.f32 %v2670, %v2707
      %v2719 = vadd.f32 %v2671, %v2701
      %v2720 = vadd.f32 %v2672, %v2708
      %v2721 = vadd.f32 %v2673, %v2709
      %2722 = vset.pattern.permute.xlu0 48
      %2723 = vperm.xlu0 %2722, %v249
      %v2724 = vpop.permute.xlu0 %2723
      %2726 = vset.pattern.permute.xlu0 48
      %2727 = vperm.xlu0 %2726, %v250
      %v2728 = vpop.permute.xlu0 %2727
      %v2730 = vmul.f32 %v2724, %v564
      %v2731 = vmul.f32 %v2724, %v565
      %v2732 = vmul.f32 %v2724, %v566
      %v2733 = vmul.f32 %v2728, %v567
      %v2734 = vmul.f32 %v2728, %v568
      %v2735 = vmul.f32 %v2728, %v569
      %2742 = vrot.lane.b32.xlu0 %v2730, 32
      %v2743 = vpop.permute.xlu0 %2742
      %2744 = vrot.lane.b32.xlu0 %v2731, 32
      %v2745 = vpop.permute.xlu0 %2744
      %2746 = vrot.lane.b32.xlu0 %v2732, 32
      %v2747 = vpop.permute.xlu0 %2746
      %2748 = vrot.lane.b32.xlu0 %v2733, 32
      %v2749 = vpop.permute.xlu0 %2748
      %2750 = vrot.lane.b32.xlu0 %v2734, 32
      %v2751 = vpop.permute.xlu0 %2750
      %2752 = vrot.lane.b32.xlu0 %v2735, 32
      %v2753 = vpop.permute.xlu0 %2752
      %v2754 = vsel %vm700, %v2743, %v2745
      %v2755 = vsel %vm700, %v2745, %v2747
      %v2756 = vsel %vm700, %v2749, %v2751
      %v2757 = vsel %vm700, %v2751, %v2753
      %v2764 = vadd.f32 %v2716, %v2743
      %v2765 = vadd.f32 %v2717, %v2754
      %v2766 = vadd.f32 %v2718, %v2755
      %v2767 = vadd.f32 %v2719, %v2749
      %v2768 = vadd.f32 %v2720, %v2756
      %v2769 = vadd.f32 %v2721, %v2757
      %vm2770 = vcmp.ge.s32.totalorder %v393, 4294967293
      %vm2771 = vcmp.ge.s32.totalorder %v394, 4294967293
      %vm2772 = vcmp.lt.s32.totalorder %v393, 13
      %vm2773 = vcmp.lt.s32.totalorder %v394, 13
      %vm2774 = vmand %vm2770, %vm2772
      %vm2775 = vmand %vm2771, %vm2773
      %v2776 = vsel %vm2774, 1, 0
      %v2777 = vsel %vm2775, 1, 0
      %vm2778 = vcmp.eq.s32.totalorder %v2776, 1
      %vm2779 = vcmp.eq.s32.totalorder %v2777, 1
      %2786 = vrot.lane.b32.xlu0 %v2764, 45
      %v2787 = vpop.permute.xlu0 %2786
      %2788 = vrot.lane.b32.xlu0 %v2765, 45
      %v2789 = vpop.permute.xlu0 %2788
      %2790 = vrot.lane.b32.xlu0 %v2766, 45
      %v2791 = vpop.permute.xlu0 %2790
      %2792 = vrot.lane.b32.xlu0 %v2767, 45
      %v2793 = vpop.permute.xlu0 %2792
      %2794 = vrot.lane.b32.xlu0 %v2768, 45
      %v2795 = vpop.permute.xlu0 %2794
      %2796 = vrot.lane.b32.xlu0 %v2769, 45
      %v2797 = vpop.permute.xlu0 %2796
      %vm2798 = vcmask 367616
      %v2799 = vsel %vm2798, %v2787, %v2789
      %v2800 = vsel %vm2798, %v2789, %v2791
      %v2801 = vsel %vm2798, %v2793, %v2795
      %v2802 = vsel %vm2798, %v2795, %v2797
      %v2807 = vsel %vm2778, %v2799, 0.0
      %v2808 = vsel %vm2779, %v2800, 0.0
      %v2809 = vsel %vm2778, %v2801, 0.0
      %v2810 = vsel %vm2779, %v2802, 0.0
      %v2811 = vadd.f32 %v2464, %v2807
      %v2812 = vadd.f32 %v2465, %v2808
      %v2813 = vadd.f32 %v2466, %v2809
      %v2814 = vadd.f32 %v2467, %v2810
      %v2817 = vrot.slane %v2811, 3
      %v2818 = vrot.slane %v2812, 3
      %v2821 = vadd.f32 %v2811, %v2817
      %v2822 = vadd.f32 %v2812, %v2818
      %v2825 = vrot.slane %v2811, 6
      %v2826 = vrot.slane %v2813, 6
      %v2827 = vsel %vm331, %v2825, %v2826
      %v2828 = vrot.slane %v2812, 6
      %v2829 = vrot.slane %v2814, 6
      %v2830 = vsel %vm331, %v2828, %v2829
      %v2833 = vadd.f32 %v2821, %v2827
      %v2834 = vadd.f32 %v2822, %v2830
      %v2835 = vxor.u32 %v2833, 2147483648
      %v2836 = vxor.u32 %v2834, 2147483648
      %v2837 = vmul.f32 %v2835, 1.442695
      %v2838 = vpow.pop %v2837
      %v2839 = vmul.f32 %v2836, 1.442695
      %v2840 = vpow.pop %v2839
      %v2841 = vadd.f32 %v2838, 1.0
      %v2842 = vadd.f32 %v2840, 1.0
      %v2843 = vrcp.pop %v2841
      %v2844 = vmul.f32 %v2841, %v2843
      %v2845 = vsub.f32 1.0, %v2844
      %v2846 = vmul.f32 %v2843, %v2845
      %v2847 = vadd.f32 %v2843, %v2846
      %vm2848 = vweird.f32 %v2841
      %vm2849 = vweird.f32 %v2843
      %vm2850 = vmor %vm2848, %vm2849
      %v2851 = vsel %vm2850, %v2843, %v2847
      %v2852 = vand.u32 2147483647, %v2841
      %vm2853 = vcmp.eq.f32.partialorder %v2852, 8.507059e+37
      %v2854 = vand.u32 %v2841, 2147483648
      %v2855 = vor.u32 1.1754944e-38, %v2854
      %v2856 = vsel %vm2853, %v2855, %v2851
      %v2857 = vmul.f32 1.0, %v2856
      %v2858 = vrcp.pop %v2842
      %v2859 = vmul.f32 %v2842, %v2858
      %v2860 = vsub.f32 1.0, %v2859
      %v2861 = vmul.f32 %v2858, %v2860
      %v2862 = vadd.f32 %v2858, %v2861
      %vm2863 = vweird.f32 %v2842
      %vm2864 = vweird.f32 %v2858
      %vm2865 = vmor %vm2863, %vm2864
      %v2866 = vsel %vm2865, %v2858, %v2862
      %v2867 = vand.u32 2147483647, %v2842
      %vm2868 = vcmp.eq.f32.partialorder %v2867, 8.507059e+37
      %v2869 = vand.u32 %v2842, 2147483648
      %v2870 = vor.u32 1.1754944e-38, %v2869
      %v2871 = vsel %vm2868, %v2870, %v2866
      %v2872 = vmul.f32 1.0, %v2871
      %v2873 = vmul.f32 %v332, %v2857
      %v2874 = vmul.f32 %v333, %v2872
      %v2877 = vrot.slane %v2874, 7
      %v2878 = vsel %vm328, %v2873, %v2877
      %vm2879 = vcmask 1041409
      %v2880 = vsel %vm2879, %v2873, %v2877
      %v2881 = vrot.slane %v2880, 1
      %vm2882 = vcmask 1042434
      %v2883 = vsel %vm2882, %v2873, %v2877
      %v2884 = vrot.slane %v2883, 2
      %v2885 = vperm.slane %v2878, 0
      %v2886 = vperm.slane %v2878, 1
      %v2887 = vperm.slane %v2881, 0
      %v2888 = vperm.slane %v2881, 1
      %v2889 = vperm.slane %v2884, 0
      %v2890 = vperm.slane %v2884, 1
      %v2897 = vmul.f32 %v245, %v2885
      %v2898 = vmul.f32 %v246, %v2886
      %v2899 = vmul.f32 %v245, %v2887
      %v2900 = vmul.f32 %v246, %v2888
      %v2901 = vmul.f32 %v245, %v2889
      %v2902 = vmul.f32 %v246, %v2890
      %v2903 = vadd.f32 %v2897, %v2898
      %2904 = vadd.xlane.f32.xlu0 %v2903
      %v2905 = vpop.xlane.xlu0 %2904
      %v2906 = vadd.f32 %v2899, %v2900
      %2907 = vadd.xlane.f32.xlu0 %v2906
      %v2908 = vpop.xlane.xlu0 %2907
      %v2909 = vadd.f32 %v2901, %v2902
      %2910 = vadd.xlane.f32.xlu0 %v2909
      %v2911 = vpop.xlane.xlu0 %2910
      %v2912 = vmul.f32 %v2905, 0.00390625
      %v2913 = vmul.f32 %v2908, 0.00390625
      %v2914 = vmul.f32 %v2911, 0.00390625
      %v2915 = vsub.f32 %v2897, %v2912
      %v2916 = vsub.f32 %v2898, %v2912
      %v2917 = vsub.f32 %v2899, %v2913
      %v2918 = vsub.f32 %v2900, %v2913
      %v2919 = vsub.f32 %v2901, %v2914
      %v2920 = vsub.f32 %v2902, %v2914
      %v2921 = vmul.f32 %v2915, %v2915
      %v2922 = vmul.f32 %v2916, %v2916
      %v2923 = vmul.f32 %v2917, %v2917
      %v2924 = vmul.f32 %v2918, %v2918
      %v2925 = vmul.f32 %v2919, %v2919
      %v2926 = vmul.f32 %v2920, %v2920
      %v2927 = vadd.f32 %v2921, %v2922
      %2928 = vadd.xlane.f32.xlu0 %v2927
      %v2929 = vpop.xlane.xlu0 %2928
      %v2930 = vadd.f32 %v2923, %v2924
      %2931 = vadd.xlane.f32.xlu0 %v2930
      %v2932 = vpop.xlane.xlu0 %2931
      %v2933 = vadd.f32 %v2925, %v2926
      %2934 = vadd.xlane.f32.xlu0 %v2933
      %v2935 = vpop.xlane.xlu0 %2934
      %v2936 = vmul.f32 %v2929, 0.00390625
      %v2937 = vmul.f32 %v2932, 0.00390625
      %v2938 = vmul.f32 %v2935, 0.00390625
      %v2939 = vadd.f32 %v2936, 1e-05
      %v2940 = vadd.f32 %v2937, 1e-05
      %v2941 = vadd.f32 %v2938, 1e-05
      %v2942 = vrsqrt.pop %v2939
      %v2943 = vmul.f32 %v2942, %v2939
      %v2944 = vmul.f32 %v2943, %v2942
      %v2945 = vmul.f32 0.5, %v2944
      %v2946 = vsub.f32 1.5, %v2945
      %v2947 = vmul.f32 %v2942, %v2946
      %vm2948 = vweird.f32 %v2939
      %vm2949 = vweird.f32 %v2942
      %vm2950 = vmor %vm2948, %vm2949
      %v2951 = vsel %vm2950, %v2942, %v2947
      %v2952 = vrsqrt.pop %v2940
      %v2953 = vmul.f32 %v2952, %v2940
      %v2954 = vmul.f32 %v2953, %v2952
      %v2955 = vmul.f32 0.5, %v2954
      %v2956 = vsub.f32 1.5, %v2955
      %v2957 = vmul.f32 %v2952, %v2956
      %vm2958 = vweird.f32 %v2940
      %vm2959 = vweird.f32 %v2952
      %vm2960 = vmor %vm2958, %vm2959
      %v2961 = vsel %vm2960, %v2952, %v2957
      %v2962 = vrsqrt.pop %v2941
      %v2963 = vmul.f32 %v2962, %v2941
      %v2964 = vmul.f32 %v2963, %v2962
      %v2965 = vmul.f32 0.5, %v2964
      %v2966 = vsub.f32 1.5, %v2965
      %v2967 = vmul.f32 %v2962, %v2966
      %vm2968 = vweird.f32 %v2941
      %vm2969 = vweird.f32 %v2962
      %vm2970 = vmor %vm2968, %vm2969
      %v2971 = vsel %vm2970, %v2962, %v2967
      %v2972 = vmul.f32 %v2915, %v2951
      %v2973 = vmul.f32 %v2916, %v2951
      %v2974 = vmul.f32 %v2917, %v2961
      %v2975 = vmul.f32 %v2918, %v2961
      %v2976 = vmul.f32 %v2919, %v2971
      %v2977 = vmul.f32 %v2920, %v2971
      %v2978 = vadd.f32 %v2972, %v2974
      %v2979 = vadd.f32 %v2973, %v2975
      %v2980 = vadd.f32 %v2978, %v2976
      %v2981 = vadd.f32 %v2979, %v2977
      %2983 = vset.pattern.permute.xlu0 0
      %2984 = vperm.xlu0 %2983, %v251
      %v2985 = vpop.permute.xlu0 %2984
      %v2987 = vmul.f32 %v2980, %v2985
      %v2988 = vmul.f32 %v2981, %v2985
      %v2989 = vmul.f32 %v252, 3.0
      %2991 = vset.pattern.permute.xlu0 0
      %2992 = vperm.xlu0 %2991, %v2989
      %v2993 = vpop.permute.xlu0 %2992
      %v2995 = vadd.f32 %v2987, %v2993
      %v2996 = vadd.f32 %v2988, %v2993
      %v2997 = vmax.f32 %v2995, 0.0
      %v2998 = vmax.f32 %v2996, 0.0
      %2999 = vst [vmem:[%s244] sm:$0xff] %v2997
      %3000 = vst [vmem:[%s244 + $0x8] sm:$0xff] %v2998
      %p3001 = scmp.lt.s32.totalorder %s16, 1
      %s3002 = scalar_select %p3001, %s16, 1
      %s3003 = smul.addr %s3002, 2
      %s3004 = smul.addr %s3003, 8
      %s3005 = scalar_lea.vmem %s5, %s3004
      // Predicated region
      $region41: #{class_in_block_forward.1} parent=39 // pred_check
        %p3006 = pneg %p149
      $region42: #{class_in_block_forward.1} parent=39 // pred_check_branch
        %3008 = sbr.rel (%p3006) target = $region44
      $region43: #{class_in_block_forward.1} parent=39 // pred_region
        _
      $region44: #{class_in_block_forward.1} parent=39 // pred_fallthru
        _
    $region40: #{class_in_block_forward.1} parent=5 // pred_fallthru
      _
    %p3009 = scmp.le.s32.totalorder 2, %s11
    // Predicated region
    $region45: #{class_in_block_forward.1} parent=5 // pred_check
      %p3010 = pneg %p3009
    $region46: #{class_in_block_forward.1} parent=5 // pred_check_branch
      %3012 = sbr.rel (%p3010) target = $region48
    $region47: #{class_in_block_forward.1} parent=5 // pred_region
      %s3013 = ssub.s32 %s11, 2
      // Predicated region
      $region49: #{class_in_block_forward.1} parent=47 // pred_check
        %p3014 = pneg %p155
      $region50: #{class_in_block_forward.1} parent=47 // pred_check_branch
        %3016 = sbr.rel (%p3014) target = $region52
      $region51: #{class_in_block_forward.1} parent=47 // pred_region
        %p3017 = scmp.lt.s32.totalorder %s17, 1
        %s3018 = scalar_select %p3017, %s17, 1
        %s3019 = smul.addr %s3018, 2
        %s3020 = smul.addr %s3019, 8
        %s3021 = scalar_lea.vmem %s5, %s3020
      $region52: #{class_in_block_forward.1} parent=47 // pred_fallthru
        _
    $region48: #{class_in_block_forward.1} parent=5 // pred_fallthru
      _
  $region6: #{class_in_block_forward.1} parent=0 // loop_footer
    %s15 = sadd.s32 1, %s11
  $region7: #{class_in_block_forward.1} parent=0 // loop_footer_branch
    %10 = sbr.rel target = $region3
  $region8: #{class_in_block_forward.1} parent=0 // loop_exit
    _

</llo_original>
